<compile_context>
chip_gen: v7x
topology: tpu7x:2x2x1
jax: 0.10.0
libtpu: 0.0.40
codegen_flags: <defaults>
</compile_context>

<pallas_src>
import math

import jax
import jax.numpy as jnp
import numpy as np
from jax.experimental import pallas as pl
from jax.experimental.pallas import tpu as pltpu

_ROWS_TARGET = 512          # target M rows per grid step (amortizes step cost)


# ---------------------------------------------------------------------------
# Kernel bodies
# ---------------------------------------------------------------------------
def _attend_and_project(q, k, v, wo_ref, bo_ref, bb, seq, d_model, num_head,
                        d_head, mxu_dtype):
    """Shared attention core + output projection.

    q, k, v: (bb*seq, d_model) float32 with heads contiguous along the lane
    dimension; q is already scaled by 1/sqrt(d_head) (folded into Wq/bq).
    Heads never leave the lane dimension: each head is a static lane slice,
    and the output projection is accumulated per head against a sublane-
    aligned row slice of Wo, so no head split/merge transposes or lane
    concatenations are materialized.
    """
    rows = bb * seq
    wo = wo_ref[...]
    acc = None
    for h in range(num_head):
        lo = h * d_head
        qh = q[:, lo:lo + d_head].reshape(bb, seq, d_head).astype(mxu_dtype)
        kh = k[:, lo:lo + d_head].reshape(bb, seq, d_head).astype(mxu_dtype)
        vh = v[:, lo:lo + d_head].reshape(bb, seq, d_head).astype(mxu_dtype)

        # Scores / softmax in f32, batched over the folded batch elements so
        # queries never attend across batch boundaries.
        s = jnp.einsum("bqd,bkd->bqk", qh, kh,
                       preferred_element_type=jnp.float32)
        s = s - jnp.max(s, axis=-1, keepdims=True)
        p = jnp.exp(s)
        p = p * (1.0 / jnp.sum(p, axis=-1, keepdims=True))   # exact softmax
        ctx = jnp.einsum("bqk,bkd->bqd", p.astype(mxu_dtype), vh,
                         preferred_element_type=jnp.float32)

        # Per-head slice of the output projection: ctx_h @ Wo[h*dh:(h+1)*dh,:]
        # (sublane-aligned weight rows); accumulate in f32.
        term = jnp.dot(ctx.reshape(rows, d_head).astype(mxu_dtype),
                       wo[lo:lo + d_head, :],
                       preferred_element_type=jnp.float32)
        acc = term if acc is None else acc + term

    # TODO(synk): mask (mask != None) and training-mode dropout on the
    # attention probabilities are not implemented (eval-mode forward).
    return acc + bo_ref[...]


def _make_self_attn_kernel(bb, seq, d_model, num_head, d_head, mxu_dtype):
    """query is key is value: one input slab, one fused x @ Wqkv projection."""

    def kernel(x_ref, wqkv_ref, bqkv_ref, wo_ref, bo_ref, out_ref):
        x = x_ref[...].astype(mxu_dtype)                       # (rows, D)
        # Fused QKV projection: single MXU matmul with N = 3*d_model; the
        # 1/sqrt(d_head) scale is already folded into the Wq / bq columns.
        qkv = jnp.dot(x, wqkv_ref[...],
                      preferred_element_type=jnp.float32) + bqkv_ref[...]
        q = qkv[:, 0 * d_model:1 * d_model]
        k = qkv[:, 1 * d_model:2 * d_model]
        v = qkv[:, 2 * d_model:3 * d_model]
        out = _attend_and_project(q, k, v, wo_ref, bo_ref, bb, seq, d_model,
                                  num_head, d_head, mxu_dtype)
        out_ref[...] = out.astype(out_ref.dtype)

    return kernel


def _make_cross_attn_kernel(bb, seq, d_model, num_head, d_head, mxu_dtype):
    """Distinct query / key / value inputs; three narrow projections, each
    bias-added and consumed immediately (short f32 liveness)."""

    def kernel(q_ref, k_ref, v_ref, wqkv_ref, bqkv_ref, wo_ref, bo_ref,
               out_ref):
        w = wqkv_ref[...]
        b = bqkv_ref[...]

        def project(ref, t):
            lo = t * d_model
            y = jnp.dot(ref[...].astype(mxu_dtype), w[:, lo:lo + d_model],
                        preferred_element_type=jnp.float32)
            return y + b[:, lo:lo + d_model]                   # (rows, D) f32

        q = project(q_ref, 0)
        k = project(k_ref, 1)
        v = project(v_ref, 2)
        out = _attend_and_project(q, k, v, wo_ref, bo_ref, bb, seq, d_model,
                                  num_head, d_head, mxu_dtype)
        out_ref[...] = out.astype(out_ref.dtype)

    return kernel


# ---------------------------------------------------------------------------
# VMEM-aware block sizing
# ---------------------------------------------------------------------------
def _vmem_capacity_bytes():
    # Trace-time hardware query; conservative fallback (v7x: 64 MiB physical)
    # if the query is unavailable.  This is a capability probe only — kernel
    # compile / runtime errors are NOT swallowed anywhere.
    try:
        return int(pltpu.get_tpu_info().vmem_capacity_bytes)
    except Exception:
        return 64 * 1024 * 1024


def _step_vmem_bytes(bb, seq, d_model, in_itemsize, out_itemsize, n_inputs):
    """Rough per-grid-step VMEM footprint estimate for the block picker."""
    rows = bb * seq
    in_bytes = n_inputs * rows * d_model * in_itemsize * 2     # double-buffered
    out_bytes = rows * d_model * out_itemsize * 2              # double-buffered
    w_bytes = 2 * (4 * d_model * d_model * 2 + 4 * d_model * 4)
    qkv_f32 = rows * 3 * d_model * 4
    scores = 2 * bb * seq * seq * 4       # one head's probs (f32 + bf16 copy)
    acc = 2 * rows * d_model * 4          # f32 context / output accumulators
    return in_bytes + out_bytes + w_bytes + qkv_f32 + scores + acc


def _pick_batch_block(batch, seq, fits):
    """Largest batch fold whose (bb*seq, D) row block stays sublane-aligned,
    keeps rows <= _ROWS_TARGET and fits the VMEM budget; prefer candidates
    that leave >= 2 grid steps (both v7x TensorCores get work).  Batch sizes
    that are not a multiple of bb are zero-padded by the caller."""
    cands = [bb for bb in range(1, batch + 1)
             if (bb * seq) % 8 == 0
             and bb * seq <= max(_ROWS_TARGET, seq)
             and fits(bb)]
    if not cands:
        # One grid step over the whole batch (block == full array is always
        # layout-legal).  If this overflows VMEM the compiler fails loudly;
        # TODO(synk): sequence tiling (flash) is the real fix for that case.
        return batch
    multi = [bb for bb in cands if -(-batch // bb) >= 2]
    return max(multi) if multi else max(cands)


# ---------------------------------------------------------------------------
# Wrapper
# ---------------------------------------------------------------------------
def multi_headed_attention(query, key, value, params, num_head,
                           mxu_dtype=jnp.bfloat16, out_dtype=None):
    """Eval-mode forward of MultiHeadedAttention.

    query/key/value: [batch, seq, d_model].  Pass the SAME array object for
    all three to take the fused self-attention path (1/3 the input DMA).
    out_dtype defaults to query.dtype; pass jnp.bfloat16 to halve output
    writeback when the surrounding model runs bf16.
    """
    B, S, D = query.shape
    assert key.shape == (B, S, D) and value.shape == (B, S, D)
    assert D % num_head == 0, "d_model must be divisible by num_head"
    d_head = D // num_head
    if out_dtype is None:
        out_dtype = query.dtype
    scale = 1.0 / math.sqrt(d_head)
    self_attn = (query is key) and (key is value)

    # nn.Linear stores W as (out, in) -> pre-transpose so the kernel computes
    # x @ W + b.  Fold 1/sqrt(d_head) into Wq / bq (constant fold) and
    # concatenate the three projections into one (D, 3D) matrix.
    wqkv = jnp.concatenate(
        [params["wq"].T * scale, params["wk"].T, params["wv"].T],
        axis=1).astype(mxu_dtype)                               # (D, 3D)
    bqkv = jnp.concatenate(
        [params["bq"] * scale, params["bk"], params["bv"]]
    ).reshape(1, 3 * D).astype(jnp.float32)                     # (1, 3D)
    wo = params["wo"].T.astype(mxu_dtype)                       # (D, D)
    bo = params["bo"].reshape(1, D).astype(jnp.float32)         # (1, D)

    # VMEM-aware batch-block selection (+ batch padding for awkward B).
    vmem_cap = _vmem_capacity_bytes()
    budget = int(0.45 * vmem_cap)
    n_inputs = 1 if self_attn else 3
    in_isz = query.dtype.itemsize
    out_isz = jnp.dtype(out_dtype).itemsize

    def fits(bb):
        return _step_vmem_bytes(bb, S, D, in_isz, out_isz, n_inputs) <= budget

    bb = _pick_batch_block(B, S, fits)
    n_steps = -(-B // bb)
    B_pad = n_steps * bb
    rows_blk = bb * S

    def prep(x):                     # (B, S, D) -> padded (B_pad*S, D) slab
        x = x.reshape(B * S, D)      # free (contiguous merge)
        if B_pad != B:
            x = jnp.pad(x, ((0, (B_pad - B) * S), (0, 0)))
        return x

    # 2-D row-slab blocks: lane-dense whenever d_model % 128 == 0 (production
    # sizes); for d_model < 128 (this test) the block spans the full lane
    # extent of the array, which is the best available layout without padding.
    act_spec = pl.BlockSpec((rows_blk, D), lambda i: (i, 0))
    out_spec = pl.BlockSpec((rows_blk, D), lambda i: (i, 0))
    w_specs = [
        pl.BlockSpec((D, 3 * D), lambda i: (0, 0)),
        pl.BlockSpec((1, 3 * D), lambda i: (0, 0)),
        pl.BlockSpec((D, D), lambda i: (0, 0)),
        pl.BlockSpec((1, D), lambda i: (0, 0)),
    ]

    if self_attn:
        kernel = _make_self_attn_kernel(bb, S, D, num_head, d_head, mxu_dtype)
        in_specs = [act_spec] + w_specs
        args = (prep(query), wqkv, bqkv, wo, bo)
    else:
        kernel = _make_cross_attn_kernel(bb, S, D, num_head, d_head, mxu_dtype)
        in_specs = [act_spec, act_spec, act_spec] + w_specs
        args = (prep(query), prep(key), prep(value), wqkv, bqkv, wo, bo)

    vmem_limit = int(min(0.9 * vmem_cap,
                         max(32 * 1024 * 1024,
                             2 * _step_vmem_bytes(bb, S, D, in_isz, out_isz,
                                                  n_inputs))))

    out = pl.pallas_call(
        kernel,
        out_shape=jax.ShapeDtypeStruct((B_pad * S, D), out_dtype),
        grid_spec=pltpu.PrefetchScalarGridSpec(
            num_scalar_prefetch=0,
            grid=(n_steps,),
            in_specs=in_specs,
            out_specs=out_spec),
        compiler_params=pltpu.CompilerParams(
            dimension_semantics=("parallel",),
            vmem_limit_bytes=vmem_limit),
    )(*args)

    return out[:B * S].reshape(B, S, D)   # free reshape; drop batch padding


# ---------------------------------------------------------------------------
# Pure-JAX f32 reference (mirrors the PyTorch module in eval mode)
# ---------------------------------------------------------------------------
def _reference(query, key, value, params, num_head):
    B, S, D = query.shape
    d_head = D // num_head

    def lin(x, w, b):
        return jnp.einsum("bsd,od->bso", x, w) + b

    q = lin(query, params["wq"], params["bq"])
    k = lin(key, params["wk"], params["bk"])
    v = lin(value, params["wv"], params["bv"])

    def split(x):
        return x.reshape(B, S, num_head, d_head).transpose(0, 2, 1, 3)

    q, k, v = split(q), split(k), split(v)
    s = jnp.einsum("bhqd,bhkd->bhqk", q, k) / math.sqrt(d_head)
    p = jax.nn.softmax(s, axis=-1)
    ctx = jnp.einsum("bhqk,bhkd->bhqd", p, v)
    ctx = ctx.transpose(0, 2, 1, 3).reshape(B, S, D)
    return lin(ctx, params["wo"], params["bo"])


if __name__ == "__main__":
    D = 32
    NUM_HEAD = 4

    key0 = jax.random.PRNGKey(0)
    keys = jax.random.split(key0, 20)

    # Deterministic params (PyTorch nn.Linear shapes: W (out,in), b (out,)).
    bound = 1.0 / math.sqrt(D)
    params = {
        "wq": jax.random.uniform(keys[0], (D, D), jnp.float32, -bound, bound),
        "bq": jax.random.uniform(keys[1], (D,), jnp.float32, -bound, bound),
        "wk": jax.random.uniform(keys[2], (D, D), jnp.float32, -bound, bound),
        "bk": jax.random.uniform(keys[3], (D,), jnp.float32, -bound, bound),
        "wv": jax.random.uniform(keys[4], (D, D), jnp.float32, -bound, bound),
        "bv": jax.random.uniform(keys[5], (D,), jnp.float32, -bound, bound),
        "wo": jax.random.uniform(keys[6], (D, D), jnp.float32, -bound, bound),
        "bo": jax.random.uniform(keys[7], (D,), jnp.float32, -bound, bound),
    }

    tol = dict(rtol=2e-2, atol=2e-2)   # bf16 MXU operands, f32 accumulation

    # Case 1: cross-attention, B=2, S=8 (bb=1 -> 2 parallel grid steps).
    q1 = jax.random.normal(keys[8], (2, 8, D), jnp.float32)
    k1 = jax.random.normal(keys[9], (2, 8, D), jnp.float32)
    v1 = jax.random.normal(keys[10], (2, 8, D), jnp.float32)
    out1 = jax.block_until_ready(
        multi_headed_attention(q1, k1, v1, params, NUM_HEAD))
    np.testing.assert_allclose(
        np.asarray(out1), np.asarray(_reference(q1, k1, v1, params, NUM_HEAD)),
        **tol)

    # Case 2: cross-attention, B=4, S=8 (batch folding: bb=2, 2 grid steps).
    q2 = jax.random.normal(keys[11], (4, 8, D), jnp.float32)
    k2 = jax.random.normal(keys[12], (4, 8, D), jnp.float32)
    v2 = jax.random.normal(keys[13], (4, 8, D), jnp.float32)
    out2 = jax.block_until_ready(
        multi_headed_attention(q2, k2, v2, params, NUM_HEAD))
    np.testing.assert_allclose(
        np.asarray(out2), np.asarray(_reference(q2, k2, v2, params, NUM_HEAD)),
        **tol)

    # Case 3: self-attention fast path (query is key is value), B=2, S=8.
    x3 = jax.random.normal(keys[14], (2, 8, D), jnp.float32)
    out3 = jax.block_until_ready(
        multi_headed_attention(x3, x3, x3, params, NUM_HEAD))
    np.testing.assert_allclose(
        np.asarray(out3), np.asarray(_reference(x3, x3, x3, params, NUM_HEAD)),
        **tol)

    # Case 4: non-divisor batch (B=3): bb=2 with one zero-padded batch element.
    x4 = jax.random.normal(keys[15], (3, 8, D), jnp.float32)
    out4 = jax.block_until_ready(
        multi_headed_attention(x4, x4, x4, params, NUM_HEAD))
    np.testing.assert_allclose(
        np.asarray(out4), np.asarray(_reference(x4, x4, x4, params, NUM_HEAD)),
        **tol)

    print("KERNEL_OK")
</pallas_src>

<mosaic_0001>
module attributes {stable_mosaic.version = 11 : i64} {
  func.func @kernel(%arg0: i32, %arg1: memref<8x32xf32, #tpu.memory_space<vmem>>, %arg2: memref<8x32xf32, #tpu.memory_space<vmem>>, %arg3: memref<8x32xf32, #tpu.memory_space<vmem>>, %arg4: memref<32x96xbf16, #tpu.memory_space<vmem>>, %arg5: memref<1x96xf32, #tpu.memory_space<vmem>>, %arg6: memref<32x32xbf16, #tpu.memory_space<vmem>>, %arg7: memref<1x32xf32, #tpu.memory_space<vmem>>, %arg8: memref<8x32xf32, #tpu.memory_space<vmem>>) attributes {dimension_semantics = [#tpu.dimension_semantics<parallel>], iteration_bounds = array<i64: 2>, scalar_prefetch = 0 : i64, scratch_operands = 0 : i64, tpu.core_type = #tpu.core_type<tc>, window_params = [{transform_indices = @transform_0, window_bounds = array<i64: 8, 32>}, {transform_indices = @transform_1, window_bounds = array<i64: 8, 32>}, {transform_indices = @transform_2, window_bounds = array<i64: 8, 32>}, {pipeline_mode = #tpu.pipeline_mode<synchronous>, transform_indices = @transform_3, window_bounds = array<i64: 32, 96>}, {pipeline_mode = #tpu.pipeline_mode<synchronous>, transform_indices = @transform_4, window_bounds = array<i64: 1, 96>}, {pipeline_mode = #tpu.pipeline_mode<synchronous>, transform_indices = @transform_5, window_bounds = array<i64: 32, 32>}, {pipeline_mode = #tpu.pipeline_mode<synchronous>, transform_indices = @transform_6, window_bounds = array<i64: 1, 32>}, {transform_indices = @transform_7, window_bounds = array<i64: 8, 32>}]} {
    %c0 = arith.constant 0 : index
    %c0_0 = arith.constant 0 : index
    %0 = vector.load %arg4[%c0, %c0_0] : memref<32x96xbf16, #tpu.memory_space<vmem>>, vector<32x96xbf16>
    %c0_1 = arith.constant 0 : index
    %c0_2 = arith.constant 0 : index
    %1 = vector.load %arg5[%c0_1, %c0_2] : memref<1x96xf32, #tpu.memory_space<vmem>>, vector<1x96xf32>
    %c0_3 = arith.constant 0 : index
    %c0_4 = arith.constant 0 : index
    %2 = vector.load %arg1[%c0_3, %c0_4] : memref<8x32xf32, #tpu.memory_space<vmem>>, vector<8x32xf32>
    %3 = arith.truncf %2 : vector<8x32xf32> to vector<8x32xbf16>
    %4 = vector.extract_strided_slice %0 {offsets = [0, 0], sizes = [32, 32], strides = [1, 1]} : vector<32x96xbf16> to vector<32x32xbf16>
    %cst = arith.constant dense<0.000000e+00> : vector<8x32xf32>
    %5 = tpu.matmul %3, %4, %cst {dimension_numbers = #tpu.dot_dimension_numbers<[1], [0], [0], [1], [0, 0, 1, 1], [], []>} : vector<8x32xbf16>, vector<32x32xbf16>, vector<8x32xf32> -> vector<8x32xf32>
    %6 = vector.extract_strided_slice %1 {offsets = [0, 0], sizes = [1, 32], strides = [1, 1]} : vector<1x96xf32> to vector<1x32xf32>
    %7 = vector.broadcast %6 : vector<1x32xf32> to vector<8x32xf32>
    %8 = arith.addf %5, %7 : vector<8x32xf32>
    %c0_5 = arith.constant 0 : index
    %c0_6 = arith.constant 0 : index
    %9 = vector.load %arg2[%c0_5, %c0_6] : memref<8x32xf32, #tpu.memory_space<vmem>>, vector<8x32xf32>
    %10 = arith.truncf %9 : vector<8x32xf32> to vector<8x32xbf16>
    %11 = vector.extract_strided_slice %0 {offsets = [0, 32], sizes = [32, 32], strides = [1, 1]} : vector<32x96xbf16> to vector<32x32xbf16>
    %cst_7 = arith.constant dense<0.000000e+00> : vector<8x32xf32>
    %12 = tpu.matmul %10, %11, %cst_7 {dimension_numbers = #tpu.dot_dimension_numbers<[1], [0], [0], [1], [0, 0, 1, 1], [], []>} : vector<8x32xbf16>, vector<32x32xbf16>, vector<8x32xf32> -> vector<8x32xf32>
    %13 = vector.extract_strided_slice %1 {offsets = [0, 32], sizes = [1, 32], strides = [1, 1]} : vector<1x96xf32> to vector<1x32xf32>
    %14 = vector.broadcast %13 : vector<1x32xf32> to vector<8x32xf32>
    %15 = arith.addf %12, %14 : vector<8x32xf32>
    %c0_8 = arith.constant 0 : index
    %c0_9 = arith.constant 0 : index
    %16 = vector.load %arg3[%c0_8, %c0_9] : memref<8x32xf32, #tpu.memory_space<vmem>>, vector<8x32xf32>
    %17 = arith.truncf %16 : vector<8x32xf32> to vector<8x32xbf16>
    %18 = vector.extract_strided_slice %0 {offsets = [0, 64], sizes = [32, 32], strides = [1, 1]} : vector<32x96xbf16> to vector<32x32xbf16>
    %cst_10 = arith.constant dense<0.000000e+00> : vector<8x32xf32>
    %19 = tpu.matmul %17, %18, %cst_10 {dimension_numbers = #tpu.dot_dimension_numbers<[1], [0], [0], [1], [0, 0, 1, 1], [], []>} : vector<8x32xbf16>, vector<32x32xbf16>, vector<8x32xf32> -> vector<8x32xf32>
    %20 = vector.extract_strided_slice %1 {offsets = [0, 64], sizes = [1, 32], strides = [1, 1]} : vector<1x96xf32> to vector<1x32xf32>
    %21 = vector.broadcast %20 : vector<1x32xf32> to vector<8x32xf32>
    %22 = arith.addf %19, %21 : vector<8x32xf32>
    %c0_11 = arith.constant 0 : index
    %c0_12 = arith.constant 0 : index
    %23 = vector.load %arg6[%c0_11, %c0_12] : memref<32x32xbf16, #tpu.memory_space<vmem>>, vector<32x32xbf16>
    %24 = vector.extract_strided_slice %8 {offsets = [0, 0], sizes = [8, 8], strides = [1, 1]} : vector<8x32xf32> to vector<8x8xf32>
    %25 = vector.shape_cast %24 : vector<8x8xf32> to vector<1x8x8xf32>
    %26 = arith.truncf %25 : vector<1x8x8xf32> to vector<1x8x8xbf16>
    %27 = vector.extract_strided_slice %15 {offsets = [0, 0], sizes = [8, 8], strides = [1, 1]} : vector<8x32xf32> to vector<8x8xf32>
    %28 = vector.shape_cast %27 : vector<8x8xf32> to vector<1x8x8xf32>
    %29 = arith.truncf %28 : vector<1x8x8xf32> to vector<1x8x8xbf16>
    %30 = vector.extract_strided_slice %22 {offsets = [0, 0], sizes = [8, 8], strides = [1, 1]} : vector<8x32xf32> to vector<8x8xf32>
    %31 = vector.shape_cast %30 : vector<8x8xf32> to vector<1x8x8xf32>
    %32 = arith.truncf %31 : vector<1x8x8xf32> to vector<1x8x8xbf16>
    "tpu.trace_start"() <{level = 10 : i32, message = "bqd,bkd->bqk"}> : () -> ()
    %cst_13 = arith.constant dense<0.000000e+00> : vector<1x8x8xf32>
    %33 = tpu.matmul %26, %29, %cst_13 {dimension_numbers = #tpu.dot_dimension_numbers<[2], [2], [1], [1], [0, 0, 0, 1, 1, 1], [0], [0]>} : vector<1x8x8xbf16>, vector<1x8x8xbf16>, vector<1x8x8xf32> -> vector<1x8x8xf32>
    "tpu.trace_stop"() : () -> ()
    %cst_14 = arith.constant dense<0xFF800000> : vector<1x8xf32>
    %34 = vector.multi_reduction <maximumf>, %33, %cst_14 [2] : vector<1x8x8xf32> to vector<1x8xf32>
    %35 = vector.shape_cast %34 : vector<1x8xf32> to vector<1x8x1xf32>
    %36 = vector.broadcast %35 : vector<1x8x1xf32> to vector<1x8x8xf32>
    %37 = arith.subf %33, %36 : vector<1x8x8xf32>
    %38 = math.exp %37 : vector<1x8x8xf32>
    %cst_15 = arith.constant dense<0.000000e+00> : vector<1x8xf32>
    %39 = vector.multi_reduction <add>, %38, %cst_15 [2] : vector<1x8x8xf32> to vector<1x8xf32>
    %40 = vector.shape_cast %39 : vector<1x8xf32> to vector<1x8x1xf32>
    %cst_16 = arith.constant 1.000000e+00 : f32
    %41 = vector.broadcast %cst_16 : f32 to vector<1x8x1xf32>
    %42 = arith.divf %41, %40 : vector<1x8x1xf32>
    %43 = vector.broadcast %42 : vector<1x8x1xf32> to vector<1x8x8xf32>
    %44 = arith.mulf %38, %43 : vector<1x8x8xf32>
    %45 = arith.truncf %44 : vector<1x8x8xf32> to vector<1x8x8xbf16>
    "tpu.trace_start"() <{level = 10 : i32, message = "bqk,bkd->bqd"}> : () -> ()
    %cst_17 = arith.constant dense<0.000000e+00> : vector<1x8x8xf32>
    %46 = tpu.matmul %45, %32, %cst_17 {dimension_numbers = #tpu.dot_dimension_numbers<[2], [1], [1], [2], [0, 0, 0, 1, 1, 2], [0], [0]>} : vector<1x8x8xbf16>, vector<1x8x8xbf16>, vector<1x8x8xf32> -> vector<1x8x8xf32>
    "tpu.trace_stop"() : () -> ()
    %47 = vector.shape_cast %46 : vector<1x8x8xf32> to vector<8x8xf32>
    %48 = arith.truncf %47 : vector<8x8xf32> to vector<8x8xbf16>
    %49 = vector.extract_strided_slice %23 {offsets = [0, 0], sizes = [8, 32], strides = [1, 1]} : vector<32x32xbf16> to vector<8x32xbf16>
    %cst_18 = arith.constant dense<0.000000e+00> : vector<8x32xf32>
    %50 = tpu.matmul %48, %49, %cst_18 {dimension_numbers = #tpu.dot_dimension_numbers<[1], [0], [0], [1], [0, 0, 1, 1], [], []>} : vector<8x8xbf16>, vector<8x32xbf16>, vector<8x32xf32> -> vector<8x32xf32>
    %51 = vector.extract_strided_slice %8 {offsets = [0, 8], sizes = [8, 8], strides = [1, 1]} : vector<8x32xf32> to vector<8x8xf32>
    %52 = vector.shape_cast %51 : vector<8x8xf32> to vector<1x8x8xf32>
    %53 = arith.truncf %52 : vector<1x8x8xf32> to vector<1x8x8xbf16>
    %54 = vector.extract_strided_slice %15 {offsets = [0, 8], sizes = [8, 8], strides = [1, 1]} : vector<8x32xf32> to vector<8x8xf32>
    %55 = vector.shape_cast %54 : vector<8x8xf32> to vector<1x8x8xf32>
    %56 = arith.truncf %55 : vector<1x8x8xf32> to vector<1x8x8xbf16>
    %57 = vector.extract_strided_slice %22 {offsets = [0, 8], sizes = [8, 8], strides = [1, 1]} : vector<8x32xf32> to vector<8x8xf32>
    %58 = vector.shape_cast %57 : vector<8x8xf32> to vector<1x8x8xf32>
    %59 = arith.truncf %58 : vector<1x8x8xf32> to vector<1x8x8xbf16>
    "tpu.trace_start"() <{level = 10 : i32, message = "bqd,bkd->bqk"}> : () -> ()
    %cst_19 = arith.constant dense<0.000000e+00> : vector<1x8x8xf32>
    %60 = tpu.matmul %53, %56, %cst_19 {dimension_numbers = #tpu.dot_dimension_numbers<[2], [2], [1], [1], [0, 0, 0, 1, 1, 1], [0], [0]>} : vector<1x8x8xbf16>, vector<1x8x8xbf16>, vector<1x8x8xf32> -> vector<1x8x8xf32>
    "tpu.trace_stop"() : () -> ()
    %cst_20 = arith.constant dense<0xFF800000> : vector<1x8xf32>
    %61 = vector.multi_reduction <maximumf>, %60, %cst_20 [2] : vector<1x8x8xf32> to vector<1x8xf32>
    %62 = vector.shape_cast %61 : vector<1x8xf32> to vector<1x8x1xf32>
    %63 = vector.broadcast %62 : vector<1x8x1xf32> to vector<1x8x8xf32>
    %64 = arith.subf %60, %63 : vector<1x8x8xf32>
    %65 = math.exp %64 : vector<1x8x8xf32>
    %cst_21 = arith.constant dense<0.000000e+00> : vector<1x8xf32>
    %66 = vector.multi_reduction <add>, %65, %cst_21 [2] : vector<1x8x8xf32> to vector<1x8xf32>
    %67 = vector.shape_cast %66 : vector<1x8xf32> to vector<1x8x1xf32>
    %cst_22 = arith.constant 1.000000e+00 : f32
    %68 = vector.broadcast %cst_22 : f32 to vector<1x8x1xf32>
    %69 = arith.divf %68, %67 : vector<1x8x1xf32>
    %70 = vector.broadcast %69 : vector<1x8x1xf32> to vector<1x8x8xf32>
    %71 = arith.mulf %65, %70 : vector<1x8x8xf32>
    %72 = arith.truncf %71 : vector<1x8x8xf32> to vector<1x8x8xbf16>
    "tpu.trace_start"() <{level = 10 : i32, message = "bqk,bkd->bqd"}> : () -> ()
    %cst_23 = arith.constant dense<0.000000e+00> : vector<1x8x8xf32>
    %73 = tpu.matmul %72, %59, %cst_23 {dimension_numbers = #tpu.dot_dimension_numbers<[2], [1], [1], [2], [0, 0, 0, 1, 1, 2], [0], [0]>} : vector<1x8x8xbf16>, vector<1x8x8xbf16>, vector<1x8x8xf32> -> vector<1x8x8xf32>
    "tpu.trace_stop"() : () -> ()
    %74 = vector.shape_cast %73 : vector<1x8x8xf32> to vector<8x8xf32>
    %75 = arith.truncf %74 : vector<8x8xf32> to vector<8x8xbf16>
    %76 = vector.extract_strided_slice %23 {offsets = [8, 0], sizes = [8, 32], strides = [1, 1]} : vector<32x32xbf16> to vector<8x32xbf16>
    %cst_24 = arith.constant dense<0.000000e+00> : vector<8x32xf32>
    %77 = tpu.matmul %75, %76, %cst_24 {dimension_numbers = #tpu.dot_dimension_numbers<[1], [0], [0], [1], [0, 0, 1, 1], [], []>} : vector<8x8xbf16>, vector<8x32xbf16>, vector<8x32xf32> -> vector<8x32xf32>
    %78 = arith.addf %50, %77 : vector<8x32xf32>
    %79 = vector.extract_strided_slice %8 {offsets = [0, 16], sizes = [8, 8], strides = [1, 1]} : vector<8x32xf32> to vector<8x8xf32>
    %80 = vector.shape_cast %79 : vector<8x8xf32> to vector<1x8x8xf32>
    %81 = arith.truncf %80 : vector<1x8x8xf32> to vector<1x8x8xbf16>
    %82 = vector.extract_strided_slice %15 {offsets = [0, 16], sizes = [8, 8], strides = [1, 1]} : vector<8x32xf32> to vector<8x8xf32>
    %83 = vector.shape_cast %82 : vector<8x8xf32> to vector<1x8x8xf32>
    %84 = arith.truncf %83 : vector<1x8x8xf32> to vector<1x8x8xbf16>
    %85 = vector.extract_strided_slice %22 {offsets = [0, 16], sizes = [8, 8], strides = [1, 1]} : vector<8x32xf32> to vector<8x8xf32>
    %86 = vector.shape_cast %85 : vector<8x8xf32> to vector<1x8x8xf32>
    %87 = arith.truncf %86 : vector<1x8x8xf32> to vector<1x8x8xbf16>
    "tpu.trace_start"() <{level = 10 : i32, message = "bqd,bkd->bqk"}> : () -> ()
    %cst_25 = arith.constant dense<0.000000e+00> : vector<1x8x8xf32>
    %88 = tpu.matmul %81, %84, %cst_25 {dimension_numbers = #tpu.dot_dimension_numbers<[2], [2], [1], [1], [0, 0, 0, 1, 1, 1], [0], [0]>} : vector<1x8x8xbf16>, vector<1x8x8xbf16>, vector<1x8x8xf32> -> vector<1x8x8xf32>
    "tpu.trace_stop"() : () -> ()
    %cst_26 = arith.constant dense<0xFF800000> : vector<1x8xf32>
    %89 = vector.multi_reduction <maximumf>, %88, %cst_26 [2] : vector<1x8x8xf32> to vector<1x8xf32>
    %90 = vector.shape_cast %89 : vector<1x8xf32> to vector<1x8x1xf32>
    %91 = vector.broadcast %90 : vector<1x8x1xf32> to vector<1x8x8xf32>
    %92 = arith.subf %88, %91 : vector<1x8x8xf32>
    %93 = math.exp %92 : vector<1x8x8xf32>
    %cst_27 = arith.constant dense<0.000000e+00> : vector<1x8xf32>
    %94 = vector.multi_reduction <add>, %93, %cst_27 [2] : vector<1x8x8xf32> to vector<1x8xf32>
    %95 = vector.shape_cast %94 : vector<1x8xf32> to vector<1x8x1xf32>
    %cst_28 = arith.constant 1.000000e+00 : f32
    %96 = vector.broadcast %cst_28 : f32 to vector<1x8x1xf32>
    %97 = arith.divf %96, %95 : vector<1x8x1xf32>
    %98 = vector.broadcast %97 : vector<1x8x1xf32> to vector<1x8x8xf32>
    %99 = arith.mulf %93, %98 : vector<1x8x8xf32>
    %100 = arith.truncf %99 : vector<1x8x8xf32> to vector<1x8x8xbf16>
    "tpu.trace_start"() <{level = 10 : i32, message = "bqk,bkd->bqd"}> : () -> ()
    %cst_29 = arith.constant dense<0.000000e+00> : vector<1x8x8xf32>
    %101 = tpu.matmul %100, %87, %cst_29 {dimension_numbers = #tpu.dot_dimension_numbers<[2], [1], [1], [2], [0, 0, 0, 1, 1, 2], [0], [0]>} : vector<1x8x8xbf16>, vector<1x8x8xbf16>, vector<1x8x8xf32> -> vector<1x8x8xf32>
    "tpu.trace_stop"() : () -> ()
    %102 = vector.shape_cast %101 : vector<1x8x8xf32> to vector<8x8xf32>
    %103 = arith.truncf %102 : vector<8x8xf32> to vector<8x8xbf16>
    %104 = vector.extract_strided_slice %23 {offsets = [16, 0], sizes = [8, 32], strides = [1, 1]} : vector<32x32xbf16> to vector<8x32xbf16>
    %cst_30 = arith.constant dense<0.000000e+00> : vector<8x32xf32>
    %105 = tpu.matmul %103, %104, %cst_30 {dimension_numbers = #tpu.dot_dimension_numbers<[1], [0], [0], [1], [0, 0, 1, 1], [], []>} : vector<8x8xbf16>, vector<8x32xbf16>, vector<8x32xf32> -> vector<8x32xf32>
    %106 = arith.addf %78, %105 : vector<8x32xf32>
    %107 = vector.extract_strided_slice %8 {offsets = [0, 24], sizes = [8, 8], strides = [1, 1]} : vector<8x32xf32> to vector<8x8xf32>
    %108 = vector.shape_cast %107 : vector<8x8xf32> to vector<1x8x8xf32>
    %109 = arith.truncf %108 : vector<1x8x8xf32> to vector<1x8x8xbf16>
    %110 = vector.extract_strided_slice %15 {offsets = [0, 24], sizes = [8, 8], strides = [1, 1]} : vector<8x32xf32> to vector<8x8xf32>
    %111 = vector.shape_cast %110 : vector<8x8xf32> to vector<1x8x8xf32>
    %112 = arith.truncf %111 : vector<1x8x8xf32> to vector<1x8x8xbf16>
    %113 = vector.extract_strided_slice %22 {offsets = [0, 24], sizes = [8, 8], strides = [1, 1]} : vector<8x32xf32> to vector<8x8xf32>
    %114 = vector.shape_cast %113 : vector<8x8xf32> to vector<1x8x8xf32>
    %115 = arith.truncf %114 : vector<1x8x8xf32> to vector<1x8x8xbf16>
    "tpu.trace_start"() <{level = 10 : i32, message = "bqd,bkd->bqk"}> : () -> ()
    %cst_31 = arith.constant dense<0.000000e+00> : vector<1x8x8xf32>
    %116 = tpu.matmul %109, %112, %cst_31 {dimension_numbers = #tpu.dot_dimension_numbers<[2], [2], [1], [1], [0, 0, 0, 1, 1, 1], [0], [0]>} : vector<1x8x8xbf16>, vector<1x8x8xbf16>, vector<1x8x8xf32> -> vector<1x8x8xf32>
    "tpu.trace_stop"() : () -> ()
    %cst_32 = arith.constant dense<0xFF800000> : vector<1x8xf32>
    %117 = vector.multi_reduction <maximumf>, %116, %cst_32 [2] : vector<1x8x8xf32> to vector<1x8xf32>
    %118 = vector.shape_cast %117 : vector<1x8xf32> to vector<1x8x1xf32>
    %119 = vector.broadcast %118 : vector<1x8x1xf32> to vector<1x8x8xf32>
    %120 = arith.subf %116, %119 : vector<1x8x8xf32>
    %121 = math.exp %120 : vector<1x8x8xf32>
    %cst_33 = arith.constant dense<0.000000e+00> : vector<1x8xf32>
    %122 = vector.multi_reduction <add>, %121, %cst_33 [2] : vector<1x8x8xf32> to vector<1x8xf32>
    %123 = vector.shape_cast %122 : vector<1x8xf32> to vector<1x8x1xf32>
    %cst_34 = arith.constant 1.000000e+00 : f32
    %124 = vector.broadcast %cst_34 : f32 to vector<1x8x1xf32>
    %125 = arith.divf %124, %123 : vector<1x8x1xf32>
    %126 = vector.broadcast %125 : vector<1x8x1xf32> to vector<1x8x8xf32>
    %127 = arith.mulf %121, %126 : vector<1x8x8xf32>
    %128 = arith.truncf %127 : vector<1x8x8xf32> to vector<1x8x8xbf16>
    "tpu.trace_start"() <{level = 10 : i32, message = "bqk,bkd->bqd"}> : () -> ()
    %cst_35 = arith.constant dense<0.000000e+00> : vector<1x8x8xf32>
    %129 = tpu.matmul %128, %115, %cst_35 {dimension_numbers = #tpu.dot_dimension_numbers<[2], [1], [1], [2], [0, 0, 0, 1, 1, 2], [0], [0]>} : vector<1x8x8xbf16>, vector<1x8x8xbf16>, vector<1x8x8xf32> -> vector<1x8x8xf32>
    "tpu.trace_stop"() : () -> ()
    %130 = vector.shape_cast %129 : vector<1x8x8xf32> to vector<8x8xf32>
    %131 = arith.truncf %130 : vector<8x8xf32> to vector<8x8xbf16>
    %132 = vector.extract_strided_slice %23 {offsets = [24, 0], sizes = [8, 32], strides = [1, 1]} : vector<32x32xbf16> to vector<8x32xbf16>
    %cst_36 = arith.constant dense<0.000000e+00> : vector<8x32xf32>
    %133 = tpu.matmul %131, %132, %cst_36 {dimension_numbers = #tpu.dot_dimension_numbers<[1], [0], [0], [1], [0, 0, 1, 1], [], []>} : vector<8x8xbf16>, vector<8x32xbf16>, vector<8x32xf32> -> vector<8x32xf32>
    %134 = arith.addf %106, %133 : vector<8x32xf32>
    %c0_37 = arith.constant 0 : index
    %c0_38 = arith.constant 0 : index
    %135 = vector.load %arg7[%c0_37, %c0_38] : memref<1x32xf32, #tpu.memory_space<vmem>>, vector<1x32xf32>
    %136 = vector.broadcast %135 : vector<1x32xf32> to vector<8x32xf32>
    %137 = arith.addf %134, %136 : vector<8x32xf32>
    %c0_39 = arith.constant 0 : index
    %c0_40 = arith.constant 0 : index
    %138 = vector.load %arg8[%c0_39, %c0_40] : memref<8x32xf32, #tpu.memory_space<vmem>>, vector<8x32xf32>
    tpu.vector_store %arg8[%c0_39, %c0_40], %137 {strides = array<i32>} : memref<8x32xf32, #tpu.memory_space<vmem>>, vector<8x32xf32>,
    return
  }
  func.func @transform_0(%arg0: i32) -> (i32, i32) {
    %c0_i32 = arith.constant 0 : i32
    %c0_i32_0 = arith.constant 0 : i32
    return %arg0, %c0_i32 : i32, i32
  }
  func.func @transform_1(%arg0: i32) -> (i32, i32) {
    %c0_i32 = arith.constant 0 : i32
    %c0_i32_0 = arith.constant 0 : i32
    return %arg0, %c0_i32 : i32, i32
  }
  func.func @transform_2(%arg0: i32) -> (i32, i32) {
    %c0_i32 = arith.constant 0 : i32
    %c0_i32_0 = arith.constant 0 : i32
    return %arg0, %c0_i32 : i32, i32
  }
  func.func @transform_3(%arg0: i32) -> (i32, i32) {
    %c0_i32 = arith.constant 0 : i32
    %c0_i32_0 = arith.constant 0 : i32
    %c0_i32_1 = arith.constant 0 : i32
    return %c0_i32, %c0_i32_0 : i32, i32
  }
  func.func @transform_4(%arg0: i32) -> (i32, i32) {
    %c0_i32 = arith.constant 0 : i32
    %c0_i32_0 = arith.constant 0 : i32
    %c0_i32_1 = arith.constant 0 : i32
    return %c0_i32, %c0_i32_0 : i32, i32
  }
  func.func @transform_5(%arg0: i32) -> (i32, i32) {
    %c0_i32 = arith.constant 0 : i32
    %c0_i32_0 = arith.constant 0 : i32
    %c0_i32_1 = arith.constant 0 : i32
    return %c0_i32, %c0_i32_0 : i32, i32
  }
  func.func @transform_6(%arg0: i32) -> (i32, i32) {
    %c0_i32 = arith.constant 0 : i32
    %c0_i32_0 = arith.constant 0 : i32
    %c0_i32_1 = arith.constant 0 : i32
    return %c0_i32, %c0_i32_0 : i32, i32
  }
  func.func @transform_7(%arg0: i32) -> (i32, i32) {
    %c0_i32 = arith.constant 0 : i32
    %c0_i32_0 = arith.constant 0 : i32
    return %arg0, %c0_i32 : i32, i32
  }
}

</mosaic_0001>

<llo_original>
// kernel: tpu_custom_call.1
$region0: #{tpu_custom_call.1}
  #allocation0 [shape = 'u32[]', space=smem, size = 0x4, offset = 0x4, fixed_abs, tag = 'smem constant byte address 0x4 - core index']
  #allocation1 [shape = 'u32[144,128]{1,0:T(1,128)}', space=vmem, size = 0x12000, scoped, tag = 'internal scratch']
  %s0 = inlined_call_operand.hbm [shape: f32[16,32], index: 0, kind: input, shape index: {}]
  %s1 = inlined_call_operand.hbm [shape: f32[16,32], index: 1, kind: input, shape index: {}]
  %s2 = inlined_call_operand.hbm [shape: f32[16,32], index: 2, kind: input, shape index: {}]
  %s3 = inlined_call_operand.hbm [shape: bf16[32,96], index: 3, kind: input, shape index: {}]
  %s4 = inlined_call_operand.vmem [shape: f32[1,96], index: 4, kind: input, shape index: {}]
  %s5 = inlined_call_operand.vmem [shape: bf16[32,32], index: 5, kind: input, shape index: {}]
  %s6 = inlined_call_operand.vmem [shape: f32[1,32], index: 6, kind: input, shape index: {}]
  %s7 = inlined_call_operand.hbm [shape: f32[16,32], index: 7, kind: output, shape index: {}]
  %s8 = sld [smem:[#allocation0]]
  $region77: #{tpu_custom_call.1} parent=0
    _
  %s10 = ssub.s32 1, %s8
  %s11 = scalar_select 0, %s10, %s8
  $region1: #{tpu_custom_call.1} parent=0
    #allocation2 [shape = 'u8[8192]{0}', space=vmem, size = 0x2000, scoped, tag = 'input window, operand 0']
    #allocation3 [shape = 's32[2]{0}', space=sflag, size = 0x8, scoped, tag = 'scoped memory for tpu_custom_call.1']
    #allocation4 [shape = 's32[2]{0}', space=sflag, size = 0x8, scoped, tag = 'scoped memory for tpu_custom_call.1']
    #allocation5 [shape = 'u8[8192]{0}', space=vmem, size = 0x2000, scoped, tag = 'input window, operand 1']
    #allocation6 [shape = 's32[2]{0}', space=sflag, size = 0x8, scoped, tag = 'scoped memory for tpu_custom_call.1']
    #allocation7 [shape = 'u8[8192]{0}', space=vmem, size = 0x2000, scoped, tag = 'input window, operand 2']
    #allocation8 [shape = 'u8[8192]{0}', space=vmem, size = 0x2000, scoped, tag = 'input window, operand 3, single buffered']
    #allocation9 [shape = 's32[1]{0}', space=sflag, size = 0x4, scoped, tag = 'scoped memory for tpu_custom_call.1']
    #allocation10 [shape = 'u8[8192]{0}', space=vmem, size = 0x2000, scoped, tag = 'output window, operand 0']
    %12 = vsyncpa [#allocation3], 0
    %s13 = scalar_lea.sflag [#allocation3], 1
    %14 = vsyncpa %s13, 0
    %15 = vsyncpa [#allocation6], 0
    %s16 = scalar_lea.sflag [#allocation6], 1
    %17 = vsyncpa %s16, 0
    %18 = vsyncpa [#allocation9], 0
    %19 = vsyncpa [#allocation4], 0
    %s20 = scalar_lea.sflag [#allocation4], 1
    %21 = vsyncpa %s20, 0
    loop: start=0, step=1, limit=4
    $region2: #{tpu_custom_call.1} parent=1 // loop_pre_header
      _
    $region3: #{tpu_custom_call.1} parent=1 // loop_header
      %s23 = sphi 0, %s27
      %p24 = scmp.ge.s32.totalorder %s23, 4
      %s33 = sphi 0, %s35
      %s36 = sphi 0, %s33
      %s37 = sphi 0, %s36
      %s53 = sphi 0, %s37
      %s59 = sphi 0, %s61
      %s62 = sphi 0, %s59
      %s63 = sphi 0, %s62
      %s79 = sphi 0, %s63
      %s85 = sphi 0, %s87
      %s88 = sphi 0, %s85
      %s89 = sphi 0, %s88
      %s105 = sphi 0, %s89
      %s109 = sphi 0, %s109
      %s111 = sphi 0, %s109
      %s112 = sphi 0, %s111
      %s126 = sphi 0, %s112
      %s130 = sphi 0, %s130
      %s132 = sphi 0, %s130
      %s133 = sphi 0, %s132
      %s147 = sphi 0, %s133
      %s151 = sphi 0, %s151
      %s153 = sphi 0, %s151
      %s154 = sphi 0, %s153
      %s168 = sphi 0, %s154
      %s172 = sphi 0, %s172
      %s174 = sphi 0, %s172
      %s175 = sphi 0, %s174
      %s189 = sphi 0, %s175
      %s195 = sphi 0, %s197
      %s198 = sphi 0, %s195
      %s199 = sphi 0, %s198
      %s215 = sphi 0, %s199
    $region4: #{tpu_custom_call.1} parent=1 // loop_header_branch
      %26 = sbr.rel (%p24) target = $region8
    $region5: #{tpu_custom_call.1} parent=1 // loop_body
      %s28 = ssub.s32 %s23, 1
      %s29 = ssub.s32 %s23, 2
      %s30 = sadd.s32 %s23, 1
      %s31 = ssub.s32 %s23, %s30
      %p32 = scmp.eq.s32.totalorder %s31, 0
      %s34 = sadd.s32 %s33, 1
      %s35 = scalar_select %p32, %s33, %s34
      %p38 = pneg %p32
      %p39 = scmp.eq.s32.totalorder %s23, 1
      %p40 = por %p38, %p39
      %p41 = scmp.ne.s32.totalorder %s33, %s36
      %p42 = scmp.eq.s32.totalorder %s23, 0
      %p43 = por %p41, %p42
      %p44 = scmp.ne.s32.totalorder %s33, %s36
      %p45 = scmp.eq.s32.totalorder %s28, 1
      %p46 = por %p44, %p45
      %p47 = scmp.ne.s32.totalorder %s36, %s37
      %p48 = scmp.eq.s32.totalorder %s28, 0
      %p49 = por %p47, %p48
      %p50 = scmp.ne.s32.totalorder %s36, %s37
      %p51 = scmp.eq.s32.totalorder %s29, 1
      %p52 = por %p50, %p51
      %p54 = scmp.ne.s32.totalorder %s37, %s53
      %p55 = scmp.eq.s32.totalorder %s29, 0
      %p56 = por %p54, %p55
      %s57 = ssub.s32 %s23, %s30
      %p58 = scmp.eq.s32.totalorder %s57, 0
      %s60 = sadd.s32 %s59, 1
      %s61 = scalar_select %p58, %s59, %s60
      %p64 = pneg %p58
      %p65 = scmp.eq.s32.totalorder %s23, 1
      %p66 = por %p64, %p65
      %p67 = scmp.ne.s32.totalorder %s59, %s62
      %p68 = scmp.eq.s32.totalorder %s23, 0
      %p69 = por %p67, %p68
      %p70 = scmp.ne.s32.totalorder %s59, %s62
      %p71 = scmp.eq.s32.totalorder %s28, 1
      %p72 = por %p70, %p71
      %p73 = scmp.ne.s32.totalorder %s62, %s63
      %p74 = scmp.eq.s32.totalorder %s28, 0
      %p75 = por %p73, %p74
      %p76 = scmp.ne.s32.totalorder %s62, %s63
      %p77 = scmp.eq.s32.totalorder %s29, 1
      %p78 = por %p76, %p77
      %p80 = scmp.ne.s32.totalorder %s63, %s79
      %p81 = scmp.eq.s32.totalorder %s29, 0
      %p82 = por %p80, %p81
      %s83 = ssub.s32 %s23, %s30
      %p84 = scmp.eq.s32.totalorder %s83, 0
      %s86 = sadd.s32 %s85, 1
      %s87 = scalar_select %p84, %s85, %s86
      %p90 = pneg %p84
      %p91 = scmp.eq.s32.totalorder %s23, 1
      %p92 = por %p90, %p91
      %p93 = scmp.ne.s32.totalorder %s85, %s88
      %p94 = scmp.eq.s32.totalorder %s23, 0
      %p95 = por %p93, %p94
      %p96 = scmp.ne.s32.totalorder %s85, %s88
      %p97 = scmp.eq.s32.totalorder %s28, 1
      %p98 = por %p96, %p97
      %p99 = scmp.ne.s32.totalorder %s88, %s89
      %p100 = scmp.eq.s32.totalorder %s28, 0
      %p101 = por %p99, %p100
      %p102 = scmp.ne.s32.totalorder %s88, %s89
      %p103 = scmp.eq.s32.totalorder %s29, 1
      %p104 = por %p102, %p103
      %p106 = scmp.ne.s32.totalorder %s89, %s105
      %p107 = scmp.eq.s32.totalorder %s29, 0
      %p108 = por %p106, %p107
      %s110 = sadd.s32 %s109, 1
      %p113 = scmp.eq.s32.totalorder %s23, 1
      %p114 = scmp.ne.s32.totalorder %s109, %s111
      %p115 = scmp.eq.s32.totalorder %s23, 0
      %p116 = por %p114, %p115
      %p117 = scmp.ne.s32.totalorder %s109, %s111
      %p118 = scmp.eq.s32.totalorder %s28, 1
      %p119 = por %p117, %p118
      %p120 = scmp.ne.s32.totalorder %s111, %s112
      %p121 = scmp.eq.s32.totalorder %s28, 0
      %p122 = por %p120, %p121
      %p123 = scmp.ne.s32.totalorder %s111, %s112
      %p124 = scmp.eq.s32.totalorder %s29, 1
      %p125 = por %p123, %p124
      %p127 = scmp.ne.s32.totalorder %s112, %s126
      %p128 = scmp.eq.s32.totalorder %s29, 0
      %p129 = por %p127, %p128
      %s131 = sadd.s32 %s130, 1
      %p134 = scmp.eq.s32.totalorder %s23, 1
      %p135 = scmp.ne.s32.totalorder %s130, %s132
      %p136 = scmp.eq.s32.totalorder %s23, 0
      %p137 = por %p135, %p136
      %p138 = scmp.ne.s32.totalorder %s130, %s132
      %p139 = scmp.eq.s32.totalorder %s28, 1
      %p140 = por %p138, %p139
      %p141 = scmp.ne.s32.totalorder %s132, %s133
      %p142 = scmp.eq.s32.totalorder %s28, 0
      %p143 = por %p141, %p142
      %p144 = scmp.ne.s32.totalorder %s132, %s133
      %p145 = scmp.eq.s32.totalorder %s29, 1
      %p146 = por %p144, %p145
      %p148 = scmp.ne.s32.totalorder %s133, %s147
      %p149 = scmp.eq.s32.totalorder %s29, 0
      %p150 = por %p148, %p149
      %s152 = sadd.s32 %s151, 1
      %p155 = scmp.eq.s32.totalorder %s23, 1
      %p156 = scmp.ne.s32.totalorder %s151, %s153
      %p157 = scmp.eq.s32.totalorder %s23, 0
      %p158 = por %p156, %p157
      %p159 = scmp.ne.s32.totalorder %s151, %s153
      %p160 = scmp.eq.s32.totalorder %s28, 1
      %p161 = por %p159, %p160
      %p162 = scmp.ne.s32.totalorder %s153, %s154
      %p163 = scmp.eq.s32.totalorder %s28, 0
      %p164 = por %p162, %p163
      %p165 = scmp.ne.s32.totalorder %s153, %s154
      %p166 = scmp.eq.s32.totalorder %s29, 1
      %p167 = por %p165, %p166
      %p169 = scmp.ne.s32.totalorder %s154, %s168
      %p170 = scmp.eq.s32.totalorder %s29, 0
      %p171 = por %p169, %p170
      %s173 = sadd.s32 %s172, 1
      %p176 = scmp.eq.s32.totalorder %s23, 1
      %p177 = scmp.ne.s32.totalorder %s172, %s174
      %p178 = scmp.eq.s32.totalorder %s23, 0
      %p179 = por %p177, %p178
      %p180 = scmp.ne.s32.totalorder %s172, %s174
      %p181 = scmp.eq.s32.totalorder %s28, 1
      %p182 = por %p180, %p181
      %p183 = scmp.ne.s32.totalorder %s174, %s175
      %p184 = scmp.eq.s32.totalorder %s28, 0
      %p185 = por %p183, %p184
      %p186 = scmp.ne.s32.totalorder %s174, %s175
      %p187 = scmp.eq.s32.totalorder %s29, 1
      %p188 = por %p186, %p187
      %p190 = scmp.ne.s32.totalorder %s175, %s189
      %p191 = scmp.eq.s32.totalorder %s29, 0
      %p192 = por %p190, %p191
      %s193 = ssub.s32 %s23, %s30
      %p194 = scmp.eq.s32.totalorder %s193, 0
      %s196 = sadd.s32 %s195, 1
      %s197 = scalar_select %p194, %s195, %s196
      %p200 = pneg %p194
      %p201 = scmp.eq.s32.totalorder %s23, 1
      %p202 = por %p200, %p201
      %p203 = scmp.ne.s32.totalorder %s195, %s198
      %p204 = scmp.eq.s32.totalorder %s23, 0
      %p205 = por %p203, %p204
      %p206 = scmp.ne.s32.totalorder %s195, %s198
      %p207 = scmp.eq.s32.totalorder %s28, 1
      %p208 = por %p206, %p207
      %p209 = scmp.ne.s32.totalorder %s198, %s199
      %p210 = scmp.eq.s32.totalorder %s28, 0
      %p211 = por %p209, %p210
      %p212 = scmp.ne.s32.totalorder %s198, %s199
      %p213 = scmp.eq.s32.totalorder %s29, 1
      %p214 = por %p212, %p213
      %p216 = scmp.ne.s32.totalorder %s199, %s215
      %p217 = scmp.eq.s32.totalorder %s29, 0
      %p218 = por %p216, %p217
      %p219 = scmp.le.s32.totalorder 1, %s23
      %p220 = scmp.lt.s32.totalorder %s23, 3
      %p221 = pnand %p219, %p220
      %p222 = pneg %p221
      // Predicated region
      $region9: #{tpu_custom_call.1} parent=5 // pred_check
        _
      $region10: #{tpu_custom_call.1} parent=5 // pred_check_branch
        %224 = sbr.rel (%p221) target = $region12
      $region11: #{tpu_custom_call.1} parent=5 // pred_region
        %s225 = ssub.s32 %s23, 1
        // Predicated region
        $region13: #{tpu_custom_call.1} parent=11 // pred_check
          %p226 = pneg %p122
        $region14: #{tpu_custom_call.1} parent=11 // pred_check_branch
          %228 = sbr.rel (%p226) target = $region16
        $region15: #{tpu_custom_call.1} parent=11 // pred_region
          %s230 = ssub.s32 256, 256
          %231 = vsyncadd [#allocation9], %s230
          %s232 = sshll.u32 [#allocation8], 4
          %s233 = int_to_ptr.vmem [resolvable:$true] %s232
          %238 = dma.hbm_to_vmem [thread:$0]  %s3, 256, %s233, [#allocation9], 64, 64, 4
        $region16: #{tpu_custom_call.1} parent=11 // pred_fallthru
          _
        // Predicated region
        $region17: #{tpu_custom_call.1} parent=11 // pred_check
          %p239 = pneg %p143
        $region18: #{tpu_custom_call.1} parent=11 // pred_check_branch
          %241 = sbr.rel (%p239) target = $region20
        $region19: #{tpu_custom_call.1} parent=11 // pred_region
          _
        $region20: #{tpu_custom_call.1} parent=11 // pred_fallthru
          _
        // Predicated region
        $region21: #{tpu_custom_call.1} parent=11 // pred_check
          %p242 = pneg %p164
        $region22: #{tpu_custom_call.1} parent=11 // pred_check_branch
          %244 = sbr.rel (%p242) target = $region24
        $region23: #{tpu_custom_call.1} parent=11 // pred_region
          _
        $region24: #{tpu_custom_call.1} parent=11 // pred_fallthru
          _
        // Predicated region
        $region25: #{tpu_custom_call.1} parent=11 // pred_check
          %p245 = pneg %p185
        $region26: #{tpu_custom_call.1} parent=11 // pred_check_branch
          %247 = sbr.rel (%p245) target = $region28
        $region27: #{tpu_custom_call.1} parent=11 // pred_region
          _
        $region28: #{tpu_custom_call.1} parent=11 // pred_fallthru
          _
      $region12: #{tpu_custom_call.1} parent=5 // pred_fallthru
        _
      %p248 = scmp.lt.s32.totalorder %s23, 2
      // Predicated region
      $region29: #{tpu_custom_call.1} parent=5 // pred_check
        %p249 = pneg %p248
      $region30: #{tpu_custom_call.1} parent=5 // pred_check_branch
        %251 = sbr.rel (%p249) target = $region32
      $region31: #{tpu_custom_call.1} parent=5 // pred_region
        // Predicated region
        $region33: #{tpu_custom_call.1} parent=31 // pred_check
          %p252 = pneg %p43
        $region34: #{tpu_custom_call.1} parent=31 // pred_check_branch
          %254 = sbr.rel (%p252) target = $region36
        $region35: #{tpu_custom_call.1} parent=31 // pred_region
          %s255 = sand.u32 %s33, 1
          %s256 = scalar_lea.sflag [#allocation3], %s255
          %s257 = sand.u32 %s33, 1
          %s258 = smul.addr %s257, 8
          %s259 = scalar_lea.vmem [#allocation2], %s258
          %s261 = ssub.s32 128, 128
          %262 = vsyncadd %s256, %s261
          %s263 = smul.addr %s23, 128
          %s264 = scalar_lea.hbm %s0, %s263
          %s266 = sshll.u32 %s259, 4
          %s267 = int_to_ptr.vmem [resolvable:$true] %s266
          %269 = dma.hbm_to_vmem [thread:$0]  %s264, 128, %s267, %s256
        $region36: #{tpu_custom_call.1} parent=31 // pred_fallthru
          _
        // Predicated region
        $region37: #{tpu_custom_call.1} parent=31 // pred_check
          %p270 = pneg %p69
        $region38: #{tpu_custom_call.1} parent=31 // pred_check_branch
          %272 = sbr.rel (%p270) target = $region40
        $region39: #{tpu_custom_call.1} parent=31 // pred_region
          %s273 = sand.u32 %s23, 1
          %s274 = scalar_lea.sflag [#allocation6], %s273
          %s275 = sand.u32 %s59, 1
          %s276 = smul.addr %s275, 8
          %s277 = scalar_lea.vmem [#allocation5], %s276
          %s279 = ssub.s32 128, 128
          %280 = vsyncadd %s274, %s279
          %s281 = smul.addr %s23, 128
          %s282 = scalar_lea.hbm %s1, %s281
          %s284 = sshll.u32 %s277, 4
          %s285 = int_to_ptr.vmem [resolvable:$true] %s284
          %287 = dma.hbm_to_vmem [thread:$0]  %s282, 128, %s285, %s274
        $region40: #{tpu_custom_call.1} parent=31 // pred_fallthru
          _
        // Predicated region
        $region41: #{tpu_custom_call.1} parent=31 // pred_check
          %p288 = pneg %p95
        $region42: #{tpu_custom_call.1} parent=31 // pred_check_branch
          %290 = sbr.rel (%p288) target = $region44
        $region43: #{tpu_custom_call.1} parent=31 // pred_region
          %s291 = sand.u32 %s23, 1
          %s292 = scalar_lea.sflag [#allocation6], %s291
          %s293 = sand.u32 %s85, 1
          %s294 = smul.addr %s293, 8
          %s295 = scalar_lea.vmem [#allocation7], %s294
          %s297 = ssub.s32 128, 128
          %298 = vsyncadd %s292, %s297
          %s299 = smul.addr %s23, 128
          %s300 = scalar_lea.hbm %s2, %s299
          %s302 = sshll.u32 %s295, 4
          %s303 = int_to_ptr.vmem [resolvable:$true] %s302
          %305 = dma.hbm_to_vmem [thread:$0]  %s300, 128, %s303, %s292
        $region44: #{tpu_custom_call.1} parent=31 // pred_fallthru
          _
      $region32: #{tpu_custom_call.1} parent=5 // pred_fallthru
        _
      %p306 = scmp.le.s32.totalorder 1, %s23
      %p307 = scmp.lt.s32.totalorder %s23, 3
      %p308 = pnand %p306, %p307
      %p309 = pneg %p308
      // Predicated region
      $region45: #{tpu_custom_call.1} parent=5 // pred_check
        _
      $region46: #{tpu_custom_call.1} parent=5 // pred_check_branch
        %311 = sbr.rel (%p308) target = $region48
      $region47: #{tpu_custom_call.1} parent=5 // pred_region
        %s312 = ssub.s32 %s23, 1
        %s313 = sand.u32 %s36, 1
        %s314 = scalar_lea.sflag [#allocation3], %s313
        %s315 = sand.u32 %s36, 1
        %s316 = smul.addr %s315, 8
        %s317 = scalar_lea.vmem [#allocation2], %s316
        // Predicated region
        $region49: #{tpu_custom_call.1} parent=47 // pred_check
          %p318 = pneg %p49
        $region50: #{tpu_custom_call.1} parent=47 // pred_check_branch
          %320 = sbr.rel (%p318) target = $region52
        $region51: #{tpu_custom_call.1} parent=47 // pred_region
          %321 = dma.done %s314, 128
        $region52: #{tpu_custom_call.1} parent=47 // pred_fallthru
          _
        %s322 = sand.u32 %s28, 1
        %s323 = scalar_lea.sflag [#allocation6], %s322
        %s324 = sand.u32 %s62, 1
        %s325 = smul.addr %s324, 8
        %s326 = scalar_lea.vmem [#allocation5], %s325
        // Predicated region
        $region53: #{tpu_custom_call.1} parent=47 // pred_check
          %p327 = pneg %p75
        $region54: #{tpu_custom_call.1} parent=47 // pred_check_branch
          %329 = sbr.rel (%p327) target = $region56
        $region55: #{tpu_custom_call.1} parent=47 // pred_region
          %330 = dma.done %s323, 128
        $region56: #{tpu_custom_call.1} parent=47 // pred_fallthru
          _
        %s331 = sand.u32 %s28, 1
        %s332 = scalar_lea.sflag [#allocation6], %s331
        %s333 = sand.u32 %s88, 1
        %s334 = smul.addr %s333, 8
        %s335 = scalar_lea.vmem [#allocation7], %s334
        // Predicated region
        $region57: #{tpu_custom_call.1} parent=47 // pred_check
          %p336 = pneg %p101
        $region58: #{tpu_custom_call.1} parent=47 // pred_check_branch
          %338 = sbr.rel (%p336) target = $region60
        $region59: #{tpu_custom_call.1} parent=47 // pred_region
          %339 = dma.done %s332, 128
        $region60: #{tpu_custom_call.1} parent=47 // pred_fallthru
          _
        // Predicated region
        $region61: #{tpu_custom_call.1} parent=47 // pred_check
          %p340 = pneg %p122
        $region62: #{tpu_custom_call.1} parent=47 // pred_check_branch
          %342 = sbr.rel (%p340) target = $region64
        $region63: #{tpu_custom_call.1} parent=47 // pred_region
          %343 = dma.done [#allocation9], 256
        $region64: #{tpu_custom_call.1} parent=47 // pred_fallthru
          _
        %s344 = sand.u32 %s36, 1
        %s345 = scalar_lea.sflag [#allocation3], %s344
        %s346 = sand.u32 %s36, 1
        %s347 = smul.addr %s346, 8
        %s348 = scalar_lea.vmem [#allocation2], %s347
        %p349 = pneg %p49
        %p350 = pneg %p46
        %s351 = sand.u32 %s28, 1
        %s352 = scalar_lea.sflag [#allocation6], %s351
        %s353 = sand.u32 %s62, 1
        %s354 = smul.addr %s353, 8
        %s355 = scalar_lea.vmem [#allocation5], %s354
        %p356 = pneg %p75
        %p357 = pneg %p72
        %s358 = sand.u32 %s28, 1
        %s359 = scalar_lea.sflag [#allocation6], %s358
        %s360 = sand.u32 %s88, 1
        %s361 = smul.addr %s360, 8
        %s362 = scalar_lea.vmem [#allocation7], %s361
        %p363 = pneg %p101
        %p364 = pneg %p98
        %p365 = pneg %p122
        %p366 = pneg %p119
        %p367 = pneg %p143
        %p368 = pneg %p140
        %p369 = pneg %p164
        %p370 = pneg %p161
        %p371 = pneg %p185
        %p372 = pneg %p182
        %p373 = pneg %p211
        %p374 = pneg %p208
        %s375 = sand.u32 %s198, 1
        %s376 = scalar_lea.sflag [#allocation4], %s375
        %s377 = sand.u32 %s198, 1
        %s378 = smul.addr %s377, 8
        %s379 = scalar_lea.vmem [#allocation10], %s378
        %v381 = vld [vmem:[#allocation8] sm:$0xf]
        %v382 = vld [vmem:[#allocation8 + $0x4] sm:$0xf]
        %v383 = vld [vmem:[#allocation8 + $0x8] sm:$0xf]
        %v384 = vld [vmem:[#allocation8 + $0xc] sm:$0xf]
        %v385 = vld [vmem:[%s4] sm:$0x1]
        %v386 = vld [vmem:[%s317] sm:$0xff]
        %v387 = vpack.c.bf16 %v386, %v386
        %v389 = vlaneseq
        %v390 = vshrl.u32 %v389, 7
        %v391 = vsub.s32 0, %v390
        %v392 = vrot.slane %v385, %v391
        %v398 = vunpack.c.l.b16 %v381
        %v399 = vunpack.c.l.b16 %v382
        %v400 = vunpack.c.l.b16 %v383
        %v401 = vunpack.c.l.b16 %v384
        %v402 = vpack.c.b16 %v399, %v398
        %v403 = vpack.c.b16 %v401, %v400
        %vm406 = vcmask 261120
        %v408 = vsel %vm406, %v387, 0
        %410 = vmatprep.subr.bf16.mxu0 0
        %411 = vmatpush1.bf16.msra.mxu0 %v402
        %412 = vmatprep.subr.bf16.mxu0 0
        %413 = vmatpush1.bf16.msra.mxu0 %v403
        %414 = vmatprep.subr.bf16.mxu0 0
        %415 = vmatpush1.bf16.msra.mxu0 0
        %416 = vmatprep.subr.bf16.mxu0 0
        %417 = vmatpush1.bf16.msra.mxu0 0
        %418 = vmatprep.subr.bf16.mxu0 0
        %419 = vmatpush1.bf16.msra.mxu0 0
        %420 = vmatprep.subr.bf16.mxu0 0
        %421 = vmatpush1.bf16.msra.mxu0 0
        %422 = vmatprep.subr.bf16.mxu0 0
        %423 = vmatpush1.bf16.msra.mxu0 0
        %424 = vmatprep.subr.bf16.mxu0 0
        %425 = vmatpush1.bf16.msra.mxu0 0
        %426 = vmatprep.subr.bf16.mxu0 0
        %427 = vmatpush1.bf16.msra.mxu0 0
        %428 = vmatprep.subr.bf16.mxu0 0
        %429 = vmatpush1.bf16.msra.mxu0 0
        %430 = vmatprep.subr.bf16.mxu0 0
        %431 = vmatpush1.bf16.msra.mxu0 0
        %432 = vmatprep.subr.bf16.mxu0 0
        %433 = vmatpush1.bf16.msra.mxu0 0
        %434 = vmatprep.subr.bf16.mxu0 0
        %435 = vmatpush1.bf16.msra.mxu0 0
        %436 = vmatprep.subr.bf16.mxu0 0
        %437 = vmatpush1.bf16.msra.mxu0 0
        %438 = vmatprep.subr.bf16.mxu0 0
        %439 = vmatpush1.bf16.msra.mxu0 0
        %440 = vmatprep.subr.bf16.mxu0 0
        %441 = vmatpush1.bf16.msra.mxu0 0
        %442 = vmatprep.mubr.bf16.mxu0 0
        %443 = vmatmul.mubr.bf16.gmra.mrb[0].mxu0 %v408
        %v444 = vpop.f32.mrb[0].mxu0
        %v445 = vadd.f32 %v392, %v444
        %v446 = vpop.f32.mrb[0].mxu0
        %v447 = vpop.f32.mrb[0].mxu0
        %v448 = vpop.f32.mrb[0].mxu0
        %449 = vdwg.mxu0
        %v450 = vld [vmem:[%s326] sm:$0xff]
        %v451 = vpack.c.bf16 %v450, %v450
        %452 = vrot.lane.b32.xlu0 %v402, 96
        %v453 = vpop.permute.xlu0 %452
        %454 = vrot.lane.b32.xlu0 %v403, 96
        %v455 = vpop.permute.xlu0 %454
        %458 = vrot.lane.b32.xlu0 %v392, 96
        %v459 = vpop.permute.xlu0 %458
        %v462 = vsel %vm406, %v451, 0
        %464 = vmatprep.subr.bf16.mxu0 0
        %465 = vmatpush1.bf16.msra.mxu0 %v453
        %466 = vmatprep.subr.bf16.mxu0 0
        %467 = vmatpush1.bf16.msra.mxu0 %v455
        %468 = vmatprep.subr.bf16.mxu0 0
        %469 = vmatpush1.bf16.msra.mxu0 0
        %470 = vmatprep.subr.bf16.mxu0 0
        %471 = vmatpush1.bf16.msra.mxu0 0
        %472 = vmatprep.subr.bf16.mxu0 0
        %473 = vmatpush1.bf16.msra.mxu0 0
        %474 = vmatprep.subr.bf16.mxu0 0
        %475 = vmatpush1.bf16.msra.mxu0 0
        %476 = vmatprep.subr.bf16.mxu0 0
        %477 = vmatpush1.bf16.msra.mxu0 0
        %478 = vmatprep.subr.bf16.mxu0 0
        %479 = vmatpush1.bf16.msra.mxu0 0
        %480 = vmatprep.subr.bf16.mxu0 0
        %481 = vmatpush1.bf16.msra.mxu0 0
        %482 = vmatprep.subr.bf16.mxu0 0
        %483 = vmatpush1.bf16.msra.mxu0 0
        %484 = vmatprep.subr.bf16.mxu0 0
        %485 = vmatpush1.bf16.msra.mxu0 0
        %486 = vmatprep.subr.bf16.mxu0 0
        %487 = vmatpush1.bf16.msra.mxu0 0
        %488 = vmatprep.subr.bf16.mxu0 0
        %489 = vmatpush1.bf16.msra.mxu0 0
        %490 = vmatprep.subr.bf16.mxu0 0
        %491 = vmatpush1.bf16.msra.mxu0 0
        %492 = vmatprep.subr.bf16.mxu0 0
        %493 = vmatpush1.bf16.msra.mxu0 0
        %494 = vmatprep.subr.bf16.mxu0 0
        %495 = vmatpush1.bf16.msra.mxu0 0
        %496 = vmatprep.mubr.bf16.mxu0 0
        %497 = vmatmul.mubr.bf16.gmra.mrb[0].mxu0 %v462
        %v498 = vpop.f32.mrb[0].mxu0
        %v499 = vadd.f32 %v459, %v498
        %v500 = vpop.f32.mrb[0].mxu0
        %v501 = vpop.f32.mrb[0].mxu0
        %v502 = vpop.f32.mrb[0].mxu0
        %503 = vdwg.mxu0
        %v504 = vld [vmem:[%s335] sm:$0xff]
        %v505 = vpack.c.bf16 %v504, %v504
        %506 = vrot.lane.b32.xlu0 %v402, 64
        %v507 = vpop.permute.xlu0 %506
        %508 = vrot.lane.b32.xlu0 %v403, 64
        %v509 = vpop.permute.xlu0 %508
        %512 = vrot.lane.b32.xlu0 %v392, 64
        %v513 = vpop.permute.xlu0 %512
        %v516 = vsel %vm406, %v505, 0
        %518 = vmatprep.subr.bf16.mxu0 0
        %519 = vmatpush1.bf16.msra.mxu0 %v507
        %520 = vmatprep.subr.bf16.mxu0 0
        %521 = vmatpush1.bf16.msra.mxu0 %v509
        %522 = vmatprep.subr.bf16.mxu0 0
        %523 = vmatpush1.bf16.msra.mxu0 0
        %524 = vmatprep.subr.bf16.mxu0 0
        %525 = vmatpush1.bf16.msra.mxu0 0
        %526 = vmatprep.subr.bf16.mxu0 0
        %527 = vmatpush1.bf16.msra.mxu0 0
        %528 = vmatprep.subr.bf16.mxu0 0
        %529 = vmatpush1.bf16.msra.mxu0 0
        %530 = vmatprep.subr.bf16.mxu0 0
        %531 = vmatpush1.bf16.msra.mxu0 0
        %532 = vmatprep.subr.bf16.mxu0 0
        %533 = vmatpush1.bf16.msra.mxu0 0
        %534 = vmatprep.subr.bf16.mxu0 0
        %535 = vmatpush1.bf16.msra.mxu0 0
        %536 = vmatprep.subr.bf16.mxu0 0
        %537 = vmatpush1.bf16.msra.mxu0 0
        %538 = vmatprep.subr.bf16.mxu0 0
        %539 = vmatpush1.bf16.msra.mxu0 0
        %540 = vmatprep.subr.bf16.mxu0 0
        %541 = vmatpush1.bf16.msra.mxu0 0
        %542 = vmatprep.subr.bf16.mxu0 0
        %543 = vmatpush1.bf16.msra.mxu0 0
        %544 = vmatprep.subr.bf16.mxu0 0
        %545 = vmatpush1.bf16.msra.mxu0 0
        %546 = vmatprep.subr.bf16.mxu0 0
        %547 = vmatpush1.bf16.msra.mxu0 0
        %548 = vmatprep.subr.bf16.mxu0 0
        %549 = vmatpush1.bf16.msra.mxu0 0
        %550 = vmatprep.mubr.bf16.mxu0 0
        %551 = vmatmul.mubr.bf16.gmra.mrb[0].mxu0 %v516
        %v552 = vpop.f32.mrb[0].mxu0
        %v553 = vadd.f32 %v513, %v552
        %v554 = vpop.f32.mrb[0].mxu0
        %v555 = vpop.f32.mrb[0].mxu0
        %v556 = vpop.f32.mrb[0].mxu0
        %557 = vdwg.mxu0
        %v558 = vld [vmem:[%s5] sm:$0xf]
        %v559 = vld [vmem:[%s5 + $0x4] sm:$0xf]
        %v560 = vld [vmem:[%s5 + $0x8] sm:$0xf]
        %v561 = vld [vmem:[%s5 + $0xc] sm:$0xf]
        %v562 = vpack.c.bf16 %v445, %v445
        %v563 = vpack.c.bf16 %v499, %v499
        %v564 = vpack.c.bf16 %v553, %v553
        %vm565 = vcmask 64512
        %v567 = vsel %vm565, %v562, 0
        %v570 = vsel %vm565, %v563, 0
        %572 = vmatprep.subr.bf16.mxu0 0
        %573 = vmatpush1.bf16.xpose.msra.mxu0 %v570
        %574 = vmatprep.subr.bf16.mxu0 0
        %575 = vmatpush1.bf16.xpose.msra.mxu0 0
        %576 = vmatprep.subr.bf16.mxu0 0
        %577 = vmatpush1.bf16.xpose.msra.mxu0 0
        %578 = vmatprep.subr.bf16.mxu0 0
        %579 = vmatpush1.bf16.xpose.msra.mxu0 0
        %580 = vmatprep.subr.bf16.mxu0 0
        %581 = vmatpush1.bf16.xpose.msra.mxu0 0
        %582 = vmatprep.subr.bf16.mxu0 0
        %583 = vmatpush1.bf16.xpose.msra.mxu0 0
        %584 = vmatprep.subr.bf16.mxu0 0
        %585 = vmatpush1.bf16.xpose.msra.mxu0 0
        %586 = vmatprep.subr.bf16.mxu0 0
        %587 = vmatpush1.bf16.xpose.msra.mxu0 0
        %588 = vmatprep.subr.bf16.mxu0 0
        %589 = vmatpush1.bf16.xpose.msra.mxu0 0
        %590 = vmatprep.subr.bf16.mxu0 0
        %591 = vmatpush1.bf16.xpose.msra.mxu0 0
        %592 = vmatprep.subr.bf16.mxu0 0
        %593 = vmatpush1.bf16.xpose.msra.mxu0 0
        %594 = vmatprep.subr.bf16.mxu0 0
        %595 = vmatpush1.bf16.xpose.msra.mxu0 0
        %596 = vmatprep.subr.bf16.mxu0 0
        %597 = vmatpush1.bf16.xpose.msra.mxu0 0
        %598 = vmatprep.subr.bf16.mxu0 0
        %599 = vmatpush1.bf16.xpose.msra.mxu0 0
        %600 = vmatprep.subr.bf16.mxu0 0
        %601 = vmatpush1.bf16.xpose.msra.mxu0 0
        %602 = vmatprep.subr.bf16.mxu0 0
        %603 = vmatpush1.bf16.xpose.msra.mxu0 0
        %604 = vmatprep.mubr.bf16.mxu0 0
        %605 = vmatmul.mubr.bf16.gmra.mrb[0].mxu0 %v567
        %v606 = vpop.f32.mrb[0].mxu0
        %v607 = vadd.f32 0.0, %v606
        %v608 = vpop.f32.mrb[0].mxu0
        %v609 = vpop.f32.mrb[0].mxu0
        %v610 = vpop.f32.mrb[0].mxu0
        %611 = vdwg.mxu0
        %v612 = vsel %vm565, %v607, -inf
        %613 = vmax.xlane.f32.xlu0 %v612
        %v614 = vpop.xlane.xlu0 %613
        %v615 = vsub.f32 %v607, %v614
        %v616 = vmul.f32 %v615, 1.442695
        %v617 = vpow.pop %v616
        %v618 = vsel %vm565, %v617, 0.0
        %619 = vadd.xlane.f32.xlu0 %v618
        %v620 = vpop.xlane.xlu0 %619
        %v621 = vrcp.pop %v620
        %v622 = vmul.f32 1.0, %v621
        %v623 = vmul.f32 %v617, %v622
        %v624 = vpack.c.bf16 %v623, %v623
        %v626 = vsel %vm565, %v624, 0
        %vm628 = vcmask 1043456
        %v630 = vsel %vm628, %v564, 0
        %632 = vmatprep.subr.bf16.mxu0 0
        %633 = vmatpush1.bf16.msra.mxu0 %v630
        %634 = vmatprep.subr.bf16.mxu0 0
        %635 = vmatpush1.bf16.msra.mxu0 0
        %636 = vmatprep.subr.bf16.mxu0 0
        %637 = vmatpush1.bf16.msra.mxu0 0
        %638 = vmatprep.subr.bf16.mxu0 0
        %639 = vmatpush1.bf16.msra.mxu0 0
        %640 = vmatprep.subr.bf16.mxu0 0
        %641 = vmatpush1.bf16.msra.mxu0 0
        %642 = vmatprep.subr.bf16.mxu0 0
        %643 = vmatpush1.bf16.msra.mxu0 0
        %644 = vmatprep.subr.bf16.mxu0 0
        %645 = vmatpush1.bf16.msra.mxu0 0
        %646 = vmatprep.subr.bf16.mxu0 0
        %647 = vmatpush1.bf16.msra.mxu0 0
        %648 = vmatprep.subr.bf16.mxu0 0
        %649 = vmatpush1.bf16.msra.mxu0 0
        %650 = vmatprep.subr.bf16.mxu0 0
        %651 = vmatpush1.bf16.msra.mxu0 0
        %652 = vmatprep.subr.bf16.mxu0 0
        %653 = vmatpush1.bf16.msra.mxu0 0
        %654 = vmatprep.subr.bf16.mxu0 0
        %655 = vmatpush1.bf16.msra.mxu0 0
        %656 = vmatprep.subr.bf16.mxu0 0
        %657 = vmatpush1.bf16.msra.mxu0 0
        %658 = vmatprep.subr.bf16.mxu0 0
        %659 = vmatpush1.bf16.msra.mxu0 0
        %660 = vmatprep.subr.bf16.mxu0 0
        %661 = vmatpush1.bf16.msra.mxu0 0
        %662 = vmatprep.subr.bf16.mxu0 0
        %663 = vmatpush1.bf16.msra.mxu0 0
        %664 = vmatprep.mubr.bf16.mxu0 0
        %665 = vmatmul.mubr.bf16.gmra.mrb[0].mxu0 %v626
        %v666 = vpop.f32.mrb[0].mxu0
        %v667 = vadd.f32 0.0, %v666
        %v668 = vpop.f32.mrb[0].mxu0
        %v669 = vpop.f32.mrb[0].mxu0
        %v670 = vpop.f32.mrb[0].mxu0
        %671 = vdwg.mxu0
        %v672 = vpack.c.bf16 %v667, %v667
        %674 = vrot.lane.b32.xlu0 %v562, 120
        %v675 = vpop.permute.xlu0 %674
        %677 = vrot.lane.b32.xlu0 %v563, 120
        %v678 = vpop.permute.xlu0 %677
        %v680 = vsel %vm565, %v675, 0
        %v683 = vsel %vm565, %v678, 0
        %685 = vmatprep.subr.bf16.mxu0 0
        %686 = vmatpush1.bf16.xpose.msra.mxu0 %v683
        %687 = vmatprep.subr.bf16.mxu0 0
        %688 = vmatpush1.bf16.xpose.msra.mxu0 0
        %689 = vmatprep.subr.bf16.mxu0 0
        %690 = vmatpush1.bf16.xpose.msra.mxu0 0
        %691 = vmatprep.subr.bf16.mxu0 0
        %692 = vmatpush1.bf16.xpose.msra.mxu0 0
        %693 = vmatprep.subr.bf16.mxu0 0
        %694 = vmatpush1.bf16.xpose.msra.mxu0 0
        %695 = vmatprep.subr.bf16.mxu0 0
        %696 = vmatpush1.bf16.xpose.msra.mxu0 0
        %697 = vmatprep.subr.bf16.mxu0 0
        %698 = vmatpush1.bf16.xpose.msra.mxu0 0
        %699 = vmatprep.subr.bf16.mxu0 0
        %700 = vmatpush1.bf16.xpose.msra.mxu0 0
        %701 = vmatprep.subr.bf16.mxu0 0
        %702 = vmatpush1.bf16.xpose.msra.mxu0 0
        %703 = vmatprep.subr.bf16.mxu0 0
        %704 = vmatpush1.bf16.xpose.msra.mxu0 0
        %705 = vmatprep.subr.bf16.mxu0 0
        %706 = vmatpush1.bf16.xpose.msra.mxu0 0
        %707 = vmatprep.subr.bf16.mxu0 0
        %708 = vmatpush1.bf16.xpose.msra.mxu0 0
        %709 = vmatprep.subr.bf16.mxu0 0
        %710 = vmatpush1.bf16.xpose.msra.mxu0 0
        %711 = vmatprep.subr.bf16.mxu0 0
        %712 = vmatpush1.bf16.xpose.msra.mxu0 0
        %713 = vmatprep.subr.bf16.mxu0 0
        %714 = vmatpush1.bf16.xpose.msra.mxu0 0
        %715 = vmatprep.subr.bf16.mxu0 0
        %716 = vmatpush1.bf16.xpose.msra.mxu0 0
        %717 = vmatprep.mubr.bf16.mxu0 0
        %718 = vmatmul.mubr.bf16.gmra.mrb[0].mxu0 %v680
        %v719 = vpop.f32.mrb[0].mxu0
        %v720 = vadd.f32 0.0, %v719
        %v721 = vpop.f32.mrb[0].mxu0
        %v722 = vpop.f32.mrb[0].mxu0
        %v723 = vpop.f32.mrb[0].mxu0
        %724 = vdwg.mxu0
        %v725 = vsel %vm565, %v720, -inf
        %726 = vmax.xlane.f32.xlu0 %v725
        %v727 = vpop.xlane.xlu0 %726
        %v728 = vsub.f32 %v720, %v727
        %v729 = vmul.f32 %v728, 1.442695
        %v730 = vpow.pop %v729
        %v731 = vsel %vm565, %v730, 0.0
        %732 = vadd.xlane.f32.xlu0 %v731
        %v733 = vpop.xlane.xlu0 %732
        %v734 = vrcp.pop %v733
        %v735 = vmul.f32 1.0, %v734
        %v736 = vmul.f32 %v730, %v735
        %v737 = vpack.c.bf16 %v736, %v736
        %739 = vrot.lane.b32.xlu0 %v564, 120
        %v740 = vpop.permute.xlu0 %739
        %v742 = vsel %vm565, %v737, 0
        %v745 = vsel %vm628, %v740, 0
        %747 = vmatprep.subr.bf16.mxu0 0
        %748 = vmatpush1.bf16.msra.mxu0 %v745
        %749 = vmatprep.subr.bf16.mxu0 0
        %750 = vmatpush1.bf16.msra.mxu0 0
        %751 = vmatprep.subr.bf16.mxu0 0
        %752 = vmatpush1.bf16.msra.mxu0 0
        %753 = vmatprep.subr.bf16.mxu0 0
        %754 = vmatpush1.bf16.msra.mxu0 0
        %755 = vmatprep.subr.bf16.mxu0 0
        %756 = vmatpush1.bf16.msra.mxu0 0
        %757 = vmatprep.subr.bf16.mxu0 0
        %758 = vmatpush1.bf16.msra.mxu0 0
        %759 = vmatprep.subr.bf16.mxu0 0
        %760 = vmatpush1.bf16.msra.mxu0 0
        %761 = vmatprep.subr.bf16.mxu0 0
        %762 = vmatpush1.bf16.msra.mxu0 0
        %763 = vmatprep.subr.bf16.mxu0 0
        %764 = vmatpush1.bf16.msra.mxu0 0
        %765 = vmatprep.subr.bf16.mxu0 0
        %766 = vmatpush1.bf16.msra.mxu0 0
        %767 = vmatprep.subr.bf16.mxu0 0
        %768 = vmatpush1.bf16.msra.mxu0 0
        %769 = vmatprep.subr.bf16.mxu0 0
        %770 = vmatpush1.bf16.msra.mxu0 0
        %771 = vmatprep.subr.bf16.mxu0 0
        %772 = vmatpush1.bf16.msra.mxu0 0
        %773 = vmatprep.subr.bf16.mxu0 0
        %774 = vmatpush1.bf16.msra.mxu0 0
        %775 = vmatprep.subr.bf16.mxu0 0
        %776 = vmatpush1.bf16.msra.mxu0 0
        %777 = vmatprep.subr.bf16.mxu0 0
        %778 = vmatpush1.bf16.msra.mxu0 0
        %779 = vmatprep.mubr.bf16.mxu0 0
        %780 = vmatmul.mubr.bf16.gmra.mrb[0].mxu0 %v742
        %v781 = vpop.f32.mrb[0].mxu0
        %v782 = vadd.f32 0.0, %v781
        %v783 = vpop.f32.mrb[0].mxu0
        %v784 = vpop.f32.mrb[0].mxu0
        %v785 = vpop.f32.mrb[0].mxu0
        %786 = vdwg.mxu0
        %v787 = vpack.c.bf16 %v782, %v782
        %v789 = vsel %vm565, %v787, 0
        %v792 = vsel %vm628, %v559, 0
        %794 = vmatprep.subr.bf16.mxu0 0
        %795 = vmatpush1.bf16.msra.mxu0 %v792
        %796 = vmatprep.subr.bf16.mxu0 0
        %797 = vmatpush1.bf16.msra.mxu0 0
        %798 = vmatprep.subr.bf16.mxu0 0
        %799 = vmatpush1.bf16.msra.mxu0 0
        %800 = vmatprep.subr.bf16.mxu0 0
        %801 = vmatpush1.bf16.msra.mxu0 0
        %802 = vmatprep.subr.bf16.mxu0 0
        %803 = vmatpush1.bf16.msra.mxu0 0
        %804 = vmatprep.subr.bf16.mxu0 0
        %805 = vmatpush1.bf16.msra.mxu0 0
        %806 = vmatprep.subr.bf16.mxu0 0
        %807 = vmatpush1.bf16.msra.mxu0 0
        %808 = vmatprep.subr.bf16.mxu0 0
        %809 = vmatpush1.bf16.msra.mxu0 0
        %810 = vmatprep.subr.bf16.mxu0 0
        %811 = vmatpush1.bf16.msra.mxu0 0
        %812 = vmatprep.subr.bf16.mxu0 0
        %813 = vmatpush1.bf16.msra.mxu0 0
        %814 = vmatprep.subr.bf16.mxu0 0
        %815 = vmatpush1.bf16.msra.mxu0 0
        %816 = vmatprep.subr.bf16.mxu0 0
        %817 = vmatpush1.bf16.msra.mxu0 0
        %818 = vmatprep.subr.bf16.mxu0 0
        %819 = vmatpush1.bf16.msra.mxu0 0
        %820 = vmatprep.subr.bf16.mxu0 0
        %821 = vmatpush1.bf16.msra.mxu0 0
        %822 = vmatprep.subr.bf16.mxu0 0
        %823 = vmatpush1.bf16.msra.mxu0 0
        %824 = vmatprep.subr.bf16.mxu0 0
        %825 = vmatpush1.bf16.msra.mxu0 0
        %826 = vmatprep.mubr.bf16.mxu0 0
        %827 = vmatmul.mubr.bf16.gmra.mrb[0].mxu0 %v789
        %v828 = vpop.f32.mrb[0].mxu0
        %v829 = vadd.f32 0.0, %v828
        %v830 = vpop.f32.mrb[0].mxu0
        %v831 = vpop.f32.mrb[0].mxu0
        %v832 = vpop.f32.mrb[0].mxu0
        %833 = vdwg.mxu0
        %v835 = vsel %vm565, %v672, 0
        %v838 = vsel %vm628, %v558, 0
        %840 = vmatprep.subr.bf16.mxu0 0
        %841 = vmatpush1.bf16.msra.mxu0 %v838
        %842 = vmatprep.subr.bf16.mxu0 0
        %843 = vmatpush1.bf16.msra.mxu0 0
        %844 = vmatprep.subr.bf16.mxu0 0
        %845 = vmatpush1.bf16.msra.mxu0 0
        %846 = vmatprep.subr.bf16.mxu0 0
        %847 = vmatpush1.bf16.msra.mxu0 0
        %848 = vmatprep.subr.bf16.mxu0 0
        %849 = vmatpush1.bf16.msra.mxu0 0
        %850 = vmatprep.subr.bf16.mxu0 0
        %851 = vmatpush1.bf16.msra.mxu0 0
        %852 = vmatprep.subr.bf16.mxu0 0
        %853 = vmatpush1.bf16.msra.mxu0 0
        %854 = vmatprep.subr.bf16.mxu0 0
        %855 = vmatpush1.bf16.msra.mxu0 0
        %856 = vmatprep.subr.bf16.mxu0 0
        %857 = vmatpush1.bf16.msra.mxu0 0
        %858 = vmatprep.subr.bf16.mxu0 0
        %859 = vmatpush1.bf16.msra.mxu0 0
        %860 = vmatprep.subr.bf16.mxu0 0
        %861 = vmatpush1.bf16.msra.mxu0 0
        %862 = vmatprep.subr.bf16.mxu0 0
        %863 = vmatpush1.bf16.msra.mxu0 0
        %864 = vmatprep.subr.bf16.mxu0 0
        %865 = vmatpush1.bf16.msra.mxu0 0
        %866 = vmatprep.subr.bf16.mxu0 0
        %867 = vmatpush1.bf16.msra.mxu0 0
        %868 = vmatprep.subr.bf16.mxu0 0
        %869 = vmatpush1.bf16.msra.mxu0 0
        %870 = vmatprep.subr.bf16.mxu0 0
        %871 = vmatpush1.bf16.msra.mxu0 0
        %872 = vmatprep.mubr.bf16.mxu0 0
        %873 = vmatmul.mubr.bf16.gmra.mrb[0].mxu0 %v835
        %v874 = vpop.f32.mrb[0].mxu0
        %v875 = vadd.f32 %v829, %v874
        %v876 = vpop.f32.mrb[0].mxu0
        %v877 = vpop.f32.mrb[0].mxu0
        %v878 = vpop.f32.mrb[0].mxu0
        %879 = vdwg.mxu0
        %880 = vrot.lane.b32.xlu0 %v562, 112
        %v881 = vpop.permute.xlu0 %880
        %882 = vrot.lane.b32.xlu0 %v563, 112
        %v883 = vpop.permute.xlu0 %882
        %v885 = vsel %vm565, %v881, 0
        %v888 = vsel %vm565, %v883, 0
        %890 = vmatprep.subr.bf16.mxu0 0
        %891 = vmatpush1.bf16.xpose.msra.mxu0 %v888
        %892 = vmatprep.subr.bf16.mxu0 0
        %893 = vmatpush1.bf16.xpose.msra.mxu0 0
        %894 = vmatprep.subr.bf16.mxu0 0
        %895 = vmatpush1.bf16.xpose.msra.mxu0 0
        %896 = vmatprep.subr.bf16.mxu0 0
        %897 = vmatpush1.bf16.xpose.msra.mxu0 0
        %898 = vmatprep.subr.bf16.mxu0 0
        %899 = vmatpush1.bf16.xpose.msra.mxu0 0
        %900 = vmatprep.subr.bf16.mxu0 0
        %901 = vmatpush1.bf16.xpose.msra.mxu0 0
        %902 = vmatprep.subr.bf16.mxu0 0
        %903 = vmatpush1.bf16.xpose.msra.mxu0 0
        %904 = vmatprep.subr.bf16.mxu0 0
        %905 = vmatpush1.bf16.xpose.msra.mxu0 0
        %906 = vmatprep.subr.bf16.mxu0 0
        %907 = vmatpush1.bf16.xpose.msra.mxu0 0
        %908 = vmatprep.subr.bf16.mxu0 0
        %909 = vmatpush1.bf16.xpose.msra.mxu0 0
        %910 = vmatprep.subr.bf16.mxu0 0
        %911 = vmatpush1.bf16.xpose.msra.mxu0 0
        %912 = vmatprep.subr.bf16.mxu0 0
        %913 = vmatpush1.bf16.xpose.msra.mxu0 0
        %914 = vmatprep.subr.bf16.mxu0 0
        %915 = vmatpush1.bf16.xpose.msra.mxu0 0
        %916 = vmatprep.subr.bf16.mxu0 0
        %917 = vmatpush1.bf16.xpose.msra.mxu0 0
        %918 = vmatprep.subr.bf16.mxu0 0
        %919 = vmatpush1.bf16.xpose.msra.mxu0 0
        %920 = vmatprep.subr.bf16.mxu0 0
        %921 = vmatpush1.bf16.xpose.msra.mxu0 0
        %922 = vmatprep.mubr.bf16.mxu0 0
        %923 = vmatmul.mubr.bf16.gmra.mrb[0].mxu0 %v885
        %v924 = vpop.f32.mrb[0].mxu0
        %v925 = vadd.f32 0.0, %v924
        %v926 = vpop.f32.mrb[0].mxu0
        %v927 = vpop.f32.mrb[0].mxu0
        %v928 = vpop.f32.mrb[0].mxu0
        %929 = vdwg.mxu0
        %v930 = vsel %vm565, %v925, -inf
        %931 = vmax.xlane.f32.xlu0 %v930
        %v932 = vpop.xlane.xlu0 %931
        %v933 = vsub.f32 %v925, %v932
        %v934 = vmul.f32 %v933, 1.442695
        %v935 = vpow.pop %v934
        %v936 = vsel %vm565, %v935, 0.0
        %937 = vadd.xlane.f32.xlu0 %v936
        %v938 = vpop.xlane.xlu0 %937
        %v939 = vrcp.pop %v938
        %v940 = vmul.f32 1.0, %v939
        %v941 = vmul.f32 %v935, %v940
        %v942 = vpack.c.bf16 %v941, %v941
        %943 = vrot.lane.b32.xlu0 %v564, 112
        %v944 = vpop.permute.xlu0 %943
        %v946 = vsel %vm565, %v942, 0
        %v949 = vsel %vm628, %v944, 0
        %951 = vmatprep.subr.bf16.mxu0 0
        %952 = vmatpush1.bf16.msra.mxu0 %v949
        %953 = vmatprep.subr.bf16.mxu0 0
        %954 = vmatpush1.bf16.msra.mxu0 0
        %955 = vmatprep.subr.bf16.mxu0 0
        %956 = vmatpush1.bf16.msra.mxu0 0
        %957 = vmatprep.subr.bf16.mxu0 0
        %958 = vmatpush1.bf16.msra.mxu0 0
        %959 = vmatprep.subr.bf16.mxu0 0
        %960 = vmatpush1.bf16.msra.mxu0 0
        %961 = vmatprep.subr.bf16.mxu0 0
        %962 = vmatpush1.bf16.msra.mxu0 0
        %963 = vmatprep.subr.bf16.mxu0 0
        %964 = vmatpush1.bf16.msra.mxu0 0
        %965 = vmatprep.subr.bf16.mxu0 0
        %966 = vmatpush1.bf16.msra.mxu0 0
        %967 = vmatprep.subr.bf16.mxu0 0
        %968 = vmatpush1.bf16.msra.mxu0 0
        %969 = vmatprep.subr.bf16.mxu0 0
        %970 = vmatpush1.bf16.msra.mxu0 0
        %971 = vmatprep.subr.bf16.mxu0 0
        %972 = vmatpush1.bf16.msra.mxu0 0
        %973 = vmatprep.subr.bf16.mxu0 0
        %974 = vmatpush1.bf16.msra.mxu0 0
        %975 = vmatprep.subr.bf16.mxu0 0
        %976 = vmatpush1.bf16.msra.mxu0 0
        %977 = vmatprep.subr.bf16.mxu0 0
        %978 = vmatpush1.bf16.msra.mxu0 0
        %979 = vmatprep.subr.bf16.mxu0 0
        %980 = vmatpush1.bf16.msra.mxu0 0
        %981 = vmatprep.subr.bf16.mxu0 0
        %982 = vmatpush1.bf16.msra.mxu0 0
        %983 = vmatprep.mubr.bf16.mxu0 0
        %984 = vmatmul.mubr.bf16.gmra.mrb[0].mxu0 %v946
        %v985 = vpop.f32.mrb[0].mxu0
        %v986 = vadd.f32 0.0, %v985
        %v987 = vpop.f32.mrb[0].mxu0
        %v988 = vpop.f32.mrb[0].mxu0
        %v989 = vpop.f32.mrb[0].mxu0
        %990 = vdwg.mxu0
        %v991 = vpack.c.bf16 %v986, %v986
        %v993 = vsel %vm565, %v991, 0
        %v996 = vsel %vm628, %v560, 0
        %998 = vmatprep.subr.bf16.mxu0 0
        %999 = vmatpush1.bf16.msra.mxu0 %v996
        %1000 = vmatprep.subr.bf16.mxu0 0
        %1001 = vmatpush1.bf16.msra.mxu0 0
        %1002 = vmatprep.subr.bf16.mxu0 0
        %1003 = vmatpush1.bf16.msra.mxu0 0
        %1004 = vmatprep.subr.bf16.mxu0 0
        %1005 = vmatpush1.bf16.msra.mxu0 0
        %1006 = vmatprep.subr.bf16.mxu0 0
        %1007 = vmatpush1.bf16.msra.mxu0 0
        %1008 = vmatprep.subr.bf16.mxu0 0
        %1009 = vmatpush1.bf16.msra.mxu0 0
        %1010 = vmatprep.subr.bf16.mxu0 0
        %1011 = vmatpush1.bf16.msra.mxu0 0
        %1012 = vmatprep.subr.bf16.mxu0 0
        %1013 = vmatpush1.bf16.msra.mxu0 0
        %1014 = vmatprep.subr.bf16.mxu0 0
        %1015 = vmatpush1.bf16.msra.mxu0 0
        %1016 = vmatprep.subr.bf16.mxu0 0
        %1017 = vmatpush1.bf16.msra.mxu0 0
        %1018 = vmatprep.subr.bf16.mxu0 0
        %1019 = vmatpush1.bf16.msra.mxu0 0
        %1020 = vmatprep.subr.bf16.mxu0 0
        %1021 = vmatpush1.bf16.msra.mxu0 0
        %1022 = vmatprep.subr.bf16.mxu0 0
        %1023 = vmatpush1.bf16.msra.mxu0 0
        %1024 = vmatprep.subr.bf16.mxu0 0
        %1025 = vmatpush1.bf16.msra.mxu0 0
        %1026 = vmatprep.subr.bf16.mxu0 0
        %1027 = vmatpush1.bf16.msra.mxu0 0
        %1028 = vmatprep.subr.bf16.mxu0 0
        %1029 = vmatpush1.bf16.msra.mxu0 0
        %1030 = vmatprep.mubr.bf16.mxu0 0
        %1031 = vmatmul.mubr.bf16.gmra.mrb[0].mxu0 %v993
        %v1032 = vpop.f32.mrb[0].mxu0
        %v1033 = vadd.f32 0.0, %v1032
        %v1034 = vpop.f32.mrb[0].mxu0
        %v1035 = vpop.f32.mrb[0].mxu0
        %v1036 = vpop.f32.mrb[0].mxu0
        %1037 = vdwg.mxu0
        %v1038 = vadd.f32 %v875, %v1033
        %1039 = vrot.lane.b32.xlu0 %v562, 104
        %v1040 = vpop.permute.xlu0 %1039
        %1041 = vrot.lane.b32.xlu0 %v563, 104
        %v1042 = vpop.permute.xlu0 %1041
        %v1044 = vsel %vm565, %v1040, 0
        %v1047 = vsel %vm565, %v1042, 0
        %1049 = vmatprep.subr.bf16.mxu0 0
        %1050 = vmatpush1.bf16.xpose.msra.mxu0 %v1047
        %1051 = vmatprep.subr.bf16.mxu0 0
        %1052 = vmatpush1.bf16.xpose.msra.mxu0 0
        %1053 = vmatprep.subr.bf16.mxu0 0
        %1054 = vmatpush1.bf16.xpose.msra.mxu0 0
        %1055 = vmatprep.subr.bf16.mxu0 0
        %1056 = vmatpush1.bf16.xpose.msra.mxu0 0
        %1057 = vmatprep.subr.bf16.mxu0 0
        %1058 = vmatpush1.bf16.xpose.msra.mxu0 0
        %1059 = vmatprep.subr.bf16.mxu0 0
        %1060 = vmatpush1.bf16.xpose.msra.mxu0 0
        %1061 = vmatprep.subr.bf16.mxu0 0
        %1062 = vmatpush1.bf16.xpose.msra.mxu0 0
        %1063 = vmatprep.subr.bf16.mxu0 0
        %1064 = vmatpush1.bf16.xpose.msra.mxu0 0
        %1065 = vmatprep.subr.bf16.mxu0 0
        %1066 = vmatpush1.bf16.xpose.msra.mxu0 0
        %1067 = vmatprep.subr.bf16.mxu0 0
        %1068 = vmatpush1.bf16.xpose.msra.mxu0 0
        %1069 = vmatprep.subr.bf16.mxu0 0
        %1070 = vmatpush1.bf16.xpose.msra.mxu0 0
        %1071 = vmatprep.subr.bf16.mxu0 0
        %1072 = vmatpush1.bf16.xpose.msra.mxu0 0
        %1073 = vmatprep.subr.bf16.mxu0 0
        %1074 = vmatpush1.bf16.xpose.msra.mxu0 0
        %1075 = vmatprep.subr.bf16.mxu0 0
        %1076 = vmatpush1.bf16.xpose.msra.mxu0 0
        %1077 = vmatprep.subr.bf16.mxu0 0
        %1078 = vmatpush1.bf16.xpose.msra.mxu0 0
        %1079 = vmatprep.subr.bf16.mxu0 0
        %1080 = vmatpush1.bf16.xpose.msra.mxu0 0
        %1081 = vmatprep.mubr.bf16.mxu0 0
        %1082 = vmatmul.mubr.bf16.gmra.mrb[0].mxu0 %v1044
        %v1083 = vpop.f32.mrb[0].mxu0
        %v1084 = vadd.f32 0.0, %v1083
        %v1085 = vpop.f32.mrb[0].mxu0
        %v1086 = vpop.f32.mrb[0].mxu0
        %v1087 = vpop.f32.mrb[0].mxu0
        %1088 = vdwg.mxu0
        %v1089 = vsel %vm565, %v1084, -inf
        %1090 = vmax.xlane.f32.xlu0 %v1089
        %v1091 = vpop.xlane.xlu0 %1090
        %v1092 = vsub.f32 %v1084, %v1091
        %v1093 = vmul.f32 %v1092, 1.442695
        %v1094 = vpow.pop %v1093
        %v1095 = vsel %vm565, %v1094, 0.0
        %1096 = vadd.xlane.f32.xlu0 %v1095
        %v1097 = vpop.xlane.xlu0 %1096
        %v1098 = vrcp.pop %v1097
        %v1099 = vmul.f32 1.0, %v1098
        %v1100 = vmul.f32 %v1094, %v1099
        %v1101 = vpack.c.bf16 %v1100, %v1100
        %1102 = vrot.lane.b32.xlu0 %v564, 104
        %v1103 = vpop.permute.xlu0 %1102
        %v1105 = vsel %vm565, %v1101, 0
        %v1108 = vsel %vm628, %v1103, 0
        %1110 = vmatprep.subr.bf16.mxu0 0
        %1111 = vmatpush1.bf16.msra.mxu0 %v1108
        %1112 = vmatprep.subr.bf16.mxu0 0
        %1113 = vmatpush1.bf16.msra.mxu0 0
        %1114 = vmatprep.subr.bf16.mxu0 0
        %1115 = vmatpush1.bf16.msra.mxu0 0
        %1116 = vmatprep.subr.bf16.mxu0 0
        %1117 = vmatpush1.bf16.msra.mxu0 0
        %1118 = vmatprep.subr.bf16.mxu0 0
        %1119 = vmatpush1.bf16.msra.mxu0 0
        %1120 = vmatprep.subr.bf16.mxu0 0
        %1121 = vmatpush1.bf16.msra.mxu0 0
        %1122 = vmatprep.subr.bf16.mxu0 0
        %1123 = vmatpush1.bf16.msra.mxu0 0
        %1124 = vmatprep.subr.bf16.mxu0 0
        %1125 = vmatpush1.bf16.msra.mxu0 0
        %1126 = vmatprep.subr.bf16.mxu0 0
        %1127 = vmatpush1.bf16.msra.mxu0 0
        %1128 = vmatprep.subr.bf16.mxu0 0
        %1129 = vmatpush1.bf16.msra.mxu0 0
        %1130 = vmatprep.subr.bf16.mxu0 0
        %1131 = vmatpush1.bf16.msra.mxu0 0
        %1132 = vmatprep.subr.bf16.mxu0 0
        %1133 = vmatpush1.bf16.msra.mxu0 0
        %1134 = vmatprep.subr.bf16.mxu0 0
        %1135 = vmatpush1.bf16.msra.mxu0 0
        %1136 = vmatprep.subr.bf16.mxu0 0
        %1137 = vmatpush1.bf16.msra.mxu0 0
        %1138 = vmatprep.subr.bf16.mxu0 0
        %1139 = vmatpush1.bf16.msra.mxu0 0
        %1140 = vmatprep.subr.bf16.mxu0 0
        %1141 = vmatpush1.bf16.msra.mxu0 0
        %1142 = vmatprep.mubr.bf16.mxu0 0
        %1143 = vmatmul.mubr.bf16.gmra.mrb[0].mxu0 %v1105
        %v1144 = vpop.f32.mrb[0].mxu0
        %v1145 = vadd.f32 0.0, %v1144
        %v1146 = vpop.f32.mrb[0].mxu0
        %v1147 = vpop.f32.mrb[0].mxu0
        %v1148 = vpop.f32.mrb[0].mxu0
        %1149 = vdwg.mxu0
        %v1150 = vpack.c.bf16 %v1145, %v1145
        %v1152 = vsel %vm565, %v1150, 0
        %v1155 = vsel %vm628, %v561, 0
        %1157 = vmatprep.subr.bf16.mxu0 0
        %1158 = vmatpush1.bf16.msra.mxu0 %v1155
        %1159 = vmatprep.subr.bf16.mxu0 0
        %1160 = vmatpush1.bf16.msra.mxu0 0
        %1161 = vmatprep.subr.bf16.mxu0 0
        %1162 = vmatpush1.bf16.msra.mxu0 0
        %1163 = vmatprep.subr.bf16.mxu0 0
        %1164 = vmatpush1.bf16.msra.mxu0 0
        %1165 = vmatprep.subr.bf16.mxu0 0
        %1166 = vmatpush1.bf16.msra.mxu0 0
        %1167 = vmatprep.subr.bf16.mxu0 0
        %1168 = vmatpush1.bf16.msra.mxu0 0
        %1169 = vmatprep.subr.bf16.mxu0 0
        %1170 = vmatpush1.bf16.msra.mxu0 0
        %1171 = vmatprep.subr.bf16.mxu0 0
        %1172 = vmatpush1.bf16.msra.mxu0 0
        %1173 = vmatprep.subr.bf16.mxu0 0
        %1174 = vmatpush1.bf16.msra.mxu0 0
        %1175 = vmatprep.subr.bf16.mxu0 0
        %1176 = vmatpush1.bf16.msra.mxu0 0
        %1177 = vmatprep.subr.bf16.mxu0 0
        %1178 = vmatpush1.bf16.msra.mxu0 0
        %1179 = vmatprep.subr.bf16.mxu0 0
        %1180 = vmatpush1.bf16.msra.mxu0 0
        %1181 = vmatprep.subr.bf16.mxu0 0
        %1182 = vmatpush1.bf16.msra.mxu0 0
        %1183 = vmatprep.subr.bf16.mxu0 0
        %1184 = vmatpush1.bf16.msra.mxu0 0
        %1185 = vmatprep.subr.bf16.mxu0 0
        %1186 = vmatpush1.bf16.msra.mxu0 0
        %1187 = vmatprep.subr.bf16.mxu0 0
        %1188 = vmatpush1.bf16.msra.mxu0 0
        %1189 = vmatprep.mubr.bf16.mxu0 0
        %1190 = vmatmul.mubr.bf16.gmra.mrb[0].mxu0 %v1152
        %v1191 = vpop.f32.mrb[0].mxu0
        %v1192 = vadd.f32 0.0, %v1191
        %v1193 = vpop.f32.mrb[0].mxu0
        %v1194 = vpop.f32.mrb[0].mxu0
        %v1195 = vpop.f32.mrb[0].mxu0
        %1196 = vdwg.mxu0
        %v1197 = vadd.f32 %v1038, %v1192
        %v1198 = vld [vmem:[%s6] sm:$0x1]
        %v1200 = vlaneseq
        %v1201 = vshrl.u32 %v1200, 7
        %v1202 = vsub.s32 0, %v1201
        %v1203 = vrot.slane %v1198, %v1202
        %v1205 = vadd.f32 %v1197, %v1203
        %1206 = vst.msk [vmem:[%s379] sm:$0xff] %vm406, %v1205
        %s1207 = sand.u32 %s198, 1
        %s1208 = scalar_lea.sflag [#allocation4], %s1207
        %s1209 = sand.u32 %s198, 1
        %s1210 = smul.addr %s1209, 8
        %s1211 = scalar_lea.vmem [#allocation10], %s1210
        // Predicated region
        $region65: #{tpu_custom_call.1} parent=47 // pred_check
          %p1212 = pneg %p208
        $region66: #{tpu_custom_call.1} parent=47 // pred_check_branch
          %1214 = sbr.rel (%p1212) target = $region68
        $region67: #{tpu_custom_call.1} parent=47 // pred_region
          %s1216 = ssub.s32 128, 128
          %1217 = vsyncadd %s1208, %s1216
          %s1218 = smul.addr %s28, 128
          %s1219 = scalar_lea.hbm %s7, %s1218
          %s1221 = sshll.u32 %s1211, 4
          %s1222 = int_to_ptr.vmem [resolvable:$true] %s1221
          %1224 = dma.vmem_to_hbm [thread:$0]  %s1222, 128, %s1219, %s1208
        $region68: #{tpu_custom_call.1} parent=47 // pred_fallthru
          _
      $region48: #{tpu_custom_call.1} parent=5 // pred_fallthru
        _
      %p1225 = scmp.le.s32.totalorder 2, %s23
      // Predicated region
      $region69: #{tpu_custom_call.1} parent=5 // pred_check
        %p1226 = pneg %p1225
      $region70: #{tpu_custom_call.1} parent=5 // pred_check_branch
        %1228 = sbr.rel (%p1226) target = $region72
      $region71: #{tpu_custom_call.1} parent=5 // pred_region
        %s1229 = ssub.s32 %s23, 2
        // Predicated region
        $region73: #{tpu_custom_call.1} parent=71 // pred_check
          %p1230 = pneg %p214
        $region74: #{tpu_custom_call.1} parent=71 // pred_check_branch
          %1232 = sbr.rel (%p1230) target = $region76
        $region75: #{tpu_custom_call.1} parent=71 // pred_region
          %s1233 = sand.u32 %s199, 1
          %s1234 = scalar_lea.sflag [#allocation4], %s1233
          %s1235 = sand.u32 %s199, 1
          %s1236 = smul.addr %s1235, 8
          %s1237 = scalar_lea.vmem [#allocation10], %s1236
          %1238 = dma.done %s1234, 128
        $region76: #{tpu_custom_call.1} parent=71 // pred_fallthru
          _
      $region72: #{tpu_custom_call.1} parent=5 // pred_fallthru
        _
    $region6: #{tpu_custom_call.1} parent=1 // loop_footer
      %s27 = sadd.s32 1, %s23
    $region7: #{tpu_custom_call.1} parent=1 // loop_footer_branch
      %22 = sbr.rel target = $region3
    $region8: #{tpu_custom_call.1} parent=1 // loop_exit
      _
    %1239 = vsyncpa [#allocation3], 1
    %s1240 = scalar_lea.sflag [#allocation3], 1
    %1241 = vsyncpa %s1240, 1
    %1242 = vsyncpa [#allocation6], 1
    %s1243 = scalar_lea.sflag [#allocation6], 1
    %1244 = vsyncpa %s1243, 1
    %1245 = vsyncpa [#allocation9], 1
    %1246 = vsyncpa [#allocation4], 1
    %s1247 = scalar_lea.sflag [#allocation4], 1
    %1248 = vsyncpa %s1247, 1

</llo_original>
